<compile_context>
chip_gen: v5e
topology: v5e:2x2
jax: 0.10.0
libtpu: 0.0.40
codegen_flags: <defaults>
</compile_context>

<pallas_src>
import functools

import jax
import jax.numpy as jnp
from jax import lax
from jax.experimental import pallas as pl
from jax.experimental.pallas import tpu as pltpu

C = 3   # in_channels == out_channels == 3
K = 3   # kernel_size


def _round_up(v, m):
    return (v + m - 1) // m * m


def _cdiv(a, b):
    return (a + b - 1) // b


def _choose_packing(N, H, W):
    """Pick (tb images along lanes, G groups along sublanes, Wp, nb)."""
    iw = W + 2
    # Keep one group's (H, Wp) f32 MAC plane vreg-friendly (~<= 32 KiB/plane).
    wp_cap = max(128, ((32 * 1024 // 4) // max(H, 1)) // 128 * 128)
    lane_target = min(512, wp_cap)
    tb = max(1, min(N, lane_target // iw))
    wp = _round_up(max(tb * iw, 128), 128)
    # Stack groups along the sublane axis so each grid step carries ~32K real
    # pixels of MAC work (amortizes the ~0.35us per-grid-step overhead).
    g_target = max(1, 32768 // max(1, H * wp))
    G = min(_cdiv(N, tb), g_target)
    # v7x megacore: keep nb >= 2 whenever N > 1 so both TensorCores get work.
    if N > 1:
        ib_cap = max(1, _cdiv(N, 2))
        while tb * G > ib_cap and G > 1:
            G -= 1
        while tb * G > ib_cap and tb > 1:
            tb -= 1
        wp = _round_up(max(tb * iw, 128), 128)
    nb = _cdiv(N, tb * G)
    return tb, G, wp, nb


def _residual_block_kernel(xp_ref, mask_ref, w1_ref, b1_ref, w2_ref, b2_ref,
                           o_ref, h1_scr, *, groups, img_h):
    # xp_ref:   (1, C, G*(H+2), Wp) packed, per-image zero-padded input block.
    # mask_ref: (H, Wp) f32, 1.0 exactly on real-pixel columns.
    # w*_ref:   (C*C*K*K,) flattened OIHW weights (SMEM); b*_ref: (C,) (SMEM).
    # o_ref:    (1, C, G*H, Wp) lane-dense packed output block.
    # h1_scr:   (C, H+2, Wp) VMEM scratch: zero-padded relu(conv1) per group.
    H = img_h
    Hp = H + 2
    Wp = xp_ref.shape[3]

    mask = mask_ref[...]

    # Scratch border rows are conv2's vertical "same" padding: re-zero every
    # grid step (cheap: 2*C row stores) so the kernel stays correct when the
    # parallel grid axis is sharded across TensorCores (per-core scratch).
    zrow = jnp.zeros((1, Wp), jnp.float32)
    for c_ in range(C):
        h1_scr[c_, 0:1, :] = zrow
        h1_scr[c_, Hp - 1:Hp, :] = zrow

    def conv3x3(load_plane, w_ref, b_ref):
        # (ci, di) outermost: ONE aligned full-width load per (ci, di); the
        # three dj lane shifts come from pltpu.roll (XLU, off the VALU/vld
        # slots) and each tap feeds all C output-channel accumulators.
        acc = [jnp.full((H, Wp), b_ref[co], jnp.float32) for co in range(C)]
        for ci in range(C):
            for di in range(K):
                pv = load_plane(ci, di)
                taps = (pltpu.roll(pv, 1, axis=1),       # dj = 0  (col - 1)
                        pv,                              # dj = 1
                        pltpu.roll(pv, Wp - 1, axis=1))  # dj = 2  (col + 1)
                for dj in range(K):
                    tap = taps[dj]
                    for co in range(C):
                        w = w_ref[((co * C + ci) * K + di) * K + dj]
                        acc[co] = acc[co] + w * tap
        return acc

    # Each vertically stacked image group is independent (it carries its own
    # zero border rows/cols), so process groups one at a time: bounds vreg
    # pressure while a single grid step still amortizes pipeline overhead.
    for g in range(groups):
        r0 = g * Hp  # group's top border row in the packed input plane

        # ---- conv1 + bias + ReLU (masked so h1's padding columns stay 0) ----
        acc1 = conv3x3(
            lambda ci, di: xp_ref[0, ci, r0 + di:r0 + di + H, :].astype(jnp.float32),
            w1_ref, b1_ref)
        for co in range(C):
            h1_scr[co, 1:H + 1, :] = jnp.maximum(acc1[co], 0.0) * mask

        # ---- conv2 + bias + ReLU + residual add (lane-dense full-width) ----
        acc2 = conv3x3(lambda ci, di: h1_scr[ci, di:di + H, :], w2_ref, b2_ref)
        for co in range(C):
            resid = xp_ref[0, co, r0 + 1:r0 + 1 + H, :].astype(jnp.float32)
            o_ref[0, co, g * H:(g + 1) * H, :] = (
                jnp.maximum(acc2[co], 0.0) + resid).astype(o_ref.dtype)


def simple_residual_block(x, w1, b1, w2, b2):
    """x: (N, 3, H, W); w*: (3, 3, 3, 3) OIHW; b*: (3,). Returns (N, 3, H, W)."""
    N, Cx, H, W = x.shape
    assert Cx == C
    out_dtype = x.dtype

    tb, G, Wp, nb = _choose_packing(N, H, W)
    ib = tb * G
    n_pad = nb * ib
    iw, ih = W + 2, H + 2
    Ht, Ho = G * ih, G * H
    w_raw = tb * iw

    if n_pad != N:
        x = jnp.pad(x, ((0, n_pad - N), (0, 0), (0, 0), (0, 0)))

    # One fused pack pass: per-image "same" zero border + lane/sublane packing.
    #   (n_pad, C, H, W) -> (nb, C, G*(H+2), Wp), with Wp % 128 == 0.
    xp = jnp.pad(x, ((0, 0), (0, 0), (1, 1), (1, 1)))
    xp = xp.reshape(nb, G, tb, C, ih, iw)
    xp = jnp.transpose(xp, (0, 3, 1, 4, 2, 5)).reshape(nb, C, Ht, w_raw)
    if Wp != w_raw:
        xp = jnp.pad(xp, ((0, 0), (0, 0), (0, 0), (0, Wp - w_raw)))
    # TODO(synk): in a multi-layer network, keep activations in this packed
    # layout across layers to avoid the extra HBM pack/unpack passes (v5e).

    # Column mask precomputed ONCE (hoists the iota/mod/select off the kernel's
    # VALU critical slot); 1.0 exactly on real-pixel columns.
    col = jnp.arange(Wp)
    real = (col < w_raw) & ((col % iw) >= 1) & ((col % iw) <= W)
    mask = jnp.broadcast_to(real.astype(jnp.float32)[None, :], (H, Wp))

    smem = pl.BlockSpec(memory_space=pltpu.MemorySpace.SMEM)
    kernel = functools.partial(_residual_block_kernel, groups=G, img_h=H)

    # Explicit VMEM budget (matters on v7x's 64 MiB physical VMEM).
    itemsize = jnp.dtype(out_dtype).itemsize
    in_blk = C * Ht * Wp * x.dtype.itemsize
    out_blk = C * Ho * Wp * itemsize
    mask_blk = H * Wp * 4
    scratch_blk = C * ih * Wp * 4
    vmem_need = 2 * (in_blk + out_blk + mask_blk) + scratch_blk
    vmem_limit = int(min(max(2 * vmem_need + (8 << 20), 16 << 20), 48 << 20))

    flops = 2 * 2 * (C * C * K * K) * n_pad * H * W   # 2 convs, mul+add per MAC
    bytes_accessed = n_pad * C * H * W * (x.dtype.itemsize + itemsize)

    out_packed = pl.pallas_call(
        kernel,
        out_shape=jax.ShapeDtypeStruct((nb, C, Ho, Wp), out_dtype),
        grid_spec=pltpu.PrefetchScalarGridSpec(
            num_scalar_prefetch=0,
            grid=(nb,),
            in_specs=[
                pl.BlockSpec((1, C, Ht, Wp), lambda n: (n, 0, 0, 0)),
                pl.BlockSpec((H, Wp), lambda n: (0, 0)),   # column mask
                smem,  # w1 (flattened)
                smem,  # b1
                smem,  # w2 (flattened)
                smem,  # b2
            ],
            out_specs=pl.BlockSpec((1, C, Ho, Wp), lambda n: (n, 0, 0, 0)),
            scratch_shapes=[pltpu.VMEM((C, ih, Wp), jnp.float32)],
        ),
        compiler_params=pltpu.CompilerParams(
            dimension_semantics=("parallel",),
            vmem_limit_bytes=vmem_limit),
        cost_estimate=pl.CostEstimate(flops=flops, transcendentals=0,
                                      bytes_accessed=bytes_accessed),
    )(xp, mask,
      w1.reshape(-1).astype(jnp.float32), b1.astype(jnp.float32),
      w2.reshape(-1).astype(jnp.float32), b2.astype(jnp.float32))

    # Unpack: drop filler cols, per-image column borders, restore (N, C, H, W).
    # (No full-output pad pass needed since the kernel stores lane-dense rows.)
    op = out_packed[..., :w_raw].reshape(nb, C, G, H, tb, iw)[..., 1:W + 1]
    out = jnp.transpose(op, (0, 2, 4, 1, 3, 5)).reshape(n_pad, C, H, W)
    return out[:N]


def _reference(x, w1, b1, w2, b2):
    dn = lax.conv_dimension_numbers(x.shape, w1.shape, ("NCHW", "OIHW", "NCHW"))
    out = lax.conv_general_dilated(x, w1, (1, 1), "SAME", dimension_numbers=dn)
    out = jnp.maximum(out + b1[None, :, None, None], 0.0)
    out = lax.conv_general_dilated(out, w2, (1, 1), "SAME", dimension_numbers=dn)
    return jnp.maximum(out + b2[None, :, None, None], 0.0) + x


if __name__ == "__main__":
    key = jax.random.PRNGKey(0)
    kx, k1, k2, k3, k4 = jax.random.split(key, 5)

    N, H, W = 2, 16, 16
    x = jax.random.normal(kx, (N, C, H, W), jnp.float32)
    # Deterministic synthetic parameters (shapes match nn.Conv2d(3, 3, 3, padding=1)).
    w1 = 0.1 * jax.random.normal(k1, (C, C, K, K), jnp.float32)
    b1 = 0.1 * jax.random.normal(k2, (C,), jnp.float32)
    w2 = 0.1 * jax.random.normal(k3, (C, C, K, K), jnp.float32)
    b2 = 0.1 * jax.random.normal(k4, (C,), jnp.float32)

    out = simple_residual_block(x, w1, b1, w2, b2)
    out = jax.block_until_ready(out)

    ref = jax.block_until_ready(_reference(x, w1, b1, w2, b2))
    assert out.shape == (N, C, H, W)
    assert jnp.allclose(out, ref, atol=1e-4, rtol=1e-4), "mismatch vs reference conv"

    print("KERNEL_OK")
</pallas_src>

<mosaic_0001>
module attributes {stable_mosaic.version = 11 : i64} {
  func.func @_residual_block_kernel(%arg0: i32, %arg1: memref<1x3x18x128xf32, #tpu.memory_space<vmem>>, %arg2: memref<16x128xf32, #tpu.memory_space<vmem>>, %arg3: memref<81xf32, #tpu.memory_space<smem>>, %arg4: memref<3xf32, #tpu.memory_space<smem>>, %arg5: memref<81xf32, #tpu.memory_space<smem>>, %arg6: memref<3xf32, #tpu.memory_space<smem>>, %arg7: memref<1x3x16x128xf32, #tpu.memory_space<vmem>>, %arg8: memref<3x18x128xf32, #tpu.memory_space<vmem>>) attributes {dimension_semantics = [#tpu.dimension_semantics<parallel>], iteration_bounds = array<i64: 2>, scalar_prefetch = 0 : i64, scratch_operands = 1 : i64, tpu.core_type = #tpu.core_type<tc>, window_params = [{transform_indices = @transform_0, window_bounds = array<i64: 1, 3, 18, 128>}, {pipeline_mode = #tpu.pipeline_mode<synchronous>, transform_indices = @transform_1, window_bounds = array<i64: 16, 128>}, {transform_indices = @transform_2, window_bounds = array<i64: 81>}, {transform_indices = @transform_3, window_bounds = array<i64: 3>}, {transform_indices = @transform_4, window_bounds = array<i64: 81>}, {transform_indices = @transform_5, window_bounds = array<i64: 3>}, {transform_indices = @transform_6, window_bounds = array<i64: 1, 3, 16, 128>}]} {
    %c0 = arith.constant 0 : index
    %c0_0 = arith.constant 0 : index
    %0 = vector.load %arg2[%c0, %c0_0] : memref<16x128xf32, #tpu.memory_space<vmem>>, vector<16x128xf32>
    %cst = arith.constant 0.000000e+00 : f32
    %1 = vector.broadcast %cst : f32 to vector<1x128xf32>
    %c0_1 = arith.constant 0 : index
    %c0_2 = arith.constant 0 : index
    %c0_3 = arith.constant 0 : index
    %2 = vector.load %arg8[%c0_1, %c0_2, %c0_3] : memref<3x18x128xf32, #tpu.memory_space<vmem>>, vector<1x1x128xf32>
    %3 = vector.shape_cast %2 : vector<1x1x128xf32> to vector<1x128xf32>
    %4 = vector.shape_cast %1 : vector<1x128xf32> to vector<1x1x128xf32>
    tpu.vector_store %arg8[%c0_1, %c0_2, %c0_3], %4 {strides = array<i32>} : memref<3x18x128xf32, #tpu.memory_space<vmem>>, vector<1x1x128xf32>,
    %c0_4 = arith.constant 0 : index
    %c17 = arith.constant 17 : index
    %c0_5 = arith.constant 0 : index
    %5 = vector.load %arg8[%c0_4, %c17, %c0_5] : memref<3x18x128xf32, #tpu.memory_space<vmem>>, vector<1x1x128xf32>
    %6 = vector.shape_cast %5 : vector<1x1x128xf32> to vector<1x128xf32>
    %7 = vector.shape_cast %1 : vector<1x128xf32> to vector<1x1x128xf32>
    tpu.vector_store %arg8[%c0_4, %c17, %c0_5], %7 {strides = array<i32>} : memref<3x18x128xf32, #tpu.memory_space<vmem>>, vector<1x1x128xf32>,
    %c1 = arith.constant 1 : index
    %c0_6 = arith.constant 0 : index
    %c0_7 = arith.constant 0 : index
    %8 = vector.load %arg8[%c1, %c0_6, %c0_7] : memref<3x18x128xf32, #tpu.memory_space<vmem>>, vector<1x1x128xf32>
    %9 = vector.shape_cast %8 : vector<1x1x128xf32> to vector<1x128xf32>
    %10 = vector.shape_cast %1 : vector<1x128xf32> to vector<1x1x128xf32>
    tpu.vector_store %arg8[%c1, %c0_6, %c0_7], %10 {strides = array<i32>} : memref<3x18x128xf32, #tpu.memory_space<vmem>>, vector<1x1x128xf32>,
    %c1_8 = arith.constant 1 : index
    %c17_9 = arith.constant 17 : index
    %c0_10 = arith.constant 0 : index
    %11 = vector.load %arg8[%c1_8, %c17_9, %c0_10] : memref<3x18x128xf32, #tpu.memory_space<vmem>>, vector<1x1x128xf32>
    %12 = vector.shape_cast %11 : vector<1x1x128xf32> to vector<1x128xf32>
    %13 = vector.shape_cast %1 : vector<1x128xf32> to vector<1x1x128xf32>
    tpu.vector_store %arg8[%c1_8, %c17_9, %c0_10], %13 {strides = array<i32>} : memref<3x18x128xf32, #tpu.memory_space<vmem>>, vector<1x1x128xf32>,
    %c2 = arith.constant 2 : index
    %c0_11 = arith.constant 0 : index
    %c0_12 = arith.constant 0 : index
    %14 = vector.load %arg8[%c2, %c0_11, %c0_12] : memref<3x18x128xf32, #tpu.memory_space<vmem>>, vector<1x1x128xf32>
    %15 = vector.shape_cast %14 : vector<1x1x128xf32> to vector<1x128xf32>
    %16 = vector.shape_cast %1 : vector<1x128xf32> to vector<1x1x128xf32>
    tpu.vector_store %arg8[%c2, %c0_11, %c0_12], %16 {strides = array<i32>} : memref<3x18x128xf32, #tpu.memory_space<vmem>>, vector<1x1x128xf32>,
    %c2_13 = arith.constant 2 : index
    %c17_14 = arith.constant 17 : index
    %c0_15 = arith.constant 0 : index
    %17 = vector.load %arg8[%c2_13, %c17_14, %c0_15] : memref<3x18x128xf32, #tpu.memory_space<vmem>>, vector<1x1x128xf32>
    %18 = vector.shape_cast %17 : vector<1x1x128xf32> to vector<1x128xf32>
    %19 = vector.shape_cast %1 : vector<1x128xf32> to vector<1x1x128xf32>
    tpu.vector_store %arg8[%c2_13, %c17_14, %c0_15], %19 {strides = array<i32>} : memref<3x18x128xf32, #tpu.memory_space<vmem>>, vector<1x1x128xf32>,
    %c0_16 = arith.constant 0 : index
    %20 = memref.load %arg4[%c0_16] : memref<3xf32, #tpu.memory_space<smem>>
    %21 = vector.broadcast %20 : f32 to vector<16x128xf32>
    %c1_17 = arith.constant 1 : index
    %22 = memref.load %arg4[%c1_17] : memref<3xf32, #tpu.memory_space<smem>>
    %23 = vector.broadcast %22 : f32 to vector<16x128xf32>
    %c2_18 = arith.constant 2 : index
    %24 = memref.load %arg4[%c2_18] : memref<3xf32, #tpu.memory_space<smem>>
    %25 = vector.broadcast %24 : f32 to vector<16x128xf32>
    %c0_19 = arith.constant 0 : index
    %c0_20 = arith.constant 0 : index
    %c0_21 = arith.constant 0 : index
    %c0_22 = arith.constant 0 : index
    %26 = vector.load %arg1[%c0_19, %c0_20, %c0_21, %c0_22] : memref<1x3x18x128xf32, #tpu.memory_space<vmem>>, vector<1x1x16x128xf32>
    %27 = vector.shape_cast %26 : vector<1x1x16x128xf32> to vector<16x128xf32>
    %c1_i32 = arith.constant 1 : i32
    %28 = tpu.dynamic_rotate %27 by %c1_i32 dim 1 : vector<16x128xf32>, i32 -> vector<16x128xf32>
    %c127_i32 = arith.constant 127 : i32
    %29 = tpu.dynamic_rotate %27 by %c127_i32 dim 1 : vector<16x128xf32>, i32 -> vector<16x128xf32>
    %c0_23 = arith.constant 0 : index
    %30 = memref.load %arg3[%c0_23] : memref<81xf32, #tpu.memory_space<smem>>
    %31 = vector.broadcast %30 : f32 to vector<16x128xf32>
    %32 = arith.mulf %31, %28 : vector<16x128xf32>
    %33 = arith.addf %21, %32 : vector<16x128xf32>
    %c27 = arith.constant 27 : index
    %34 = memref.load %arg3[%c27] : memref<81xf32, #tpu.memory_space<smem>>
    %35 = vector.broadcast %34 : f32 to vector<16x128xf32>
    %36 = arith.mulf %35, %28 : vector<16x128xf32>
    %37 = arith.addf %23, %36 : vector<16x128xf32>
    %c54 = arith.constant 54 : index
    %38 = memref.load %arg3[%c54] : memref<81xf32, #tpu.memory_space<smem>>
    %39 = vector.broadcast %38 : f32 to vector<16x128xf32>
    %40 = arith.mulf %39, %28 : vector<16x128xf32>
    %41 = arith.addf %25, %40 : vector<16x128xf32>
    %c1_24 = arith.constant 1 : index
    %42 = memref.load %arg3[%c1_24] : memref<81xf32, #tpu.memory_space<smem>>
    %43 = vector.broadcast %42 : f32 to vector<16x128xf32>
    %44 = arith.mulf %43, %27 : vector<16x128xf32>
    %45 = arith.addf %33, %44 : vector<16x128xf32>
    %c28 = arith.constant 28 : index
    %46 = memref.load %arg3[%c28] : memref<81xf32, #tpu.memory_space<smem>>
    %47 = vector.broadcast %46 : f32 to vector<16x128xf32>
    %48 = arith.mulf %47, %27 : vector<16x128xf32>
    %49 = arith.addf %37, %48 : vector<16x128xf32>
    %c55 = arith.constant 55 : index
    %50 = memref.load %arg3[%c55] : memref<81xf32, #tpu.memory_space<smem>>
    %51 = vector.broadcast %50 : f32 to vector<16x128xf32>
    %52 = arith.mulf %51, %27 : vector<16x128xf32>
    %53 = arith.addf %41, %52 : vector<16x128xf32>
    %c2_25 = arith.constant 2 : index
    %54 = memref.load %arg3[%c2_25] : memref<81xf32, #tpu.memory_space<smem>>
    %55 = vector.broadcast %54 : f32 to vector<16x128xf32>
    %56 = arith.mulf %55, %29 : vector<16x128xf32>
    %57 = arith.addf %45, %56 : vector<16x128xf32>
    %c29 = arith.constant 29 : index
    %58 = memref.load %arg3[%c29] : memref<81xf32, #tpu.memory_space<smem>>
    %59 = vector.broadcast %58 : f32 to vector<16x128xf32>
    %60 = arith.mulf %59, %29 : vector<16x128xf32>
    %61 = arith.addf %49, %60 : vector<16x128xf32>
    %c56 = arith.constant 56 : index
    %62 = memref.load %arg3[%c56] : memref<81xf32, #tpu.memory_space<smem>>
    %63 = vector.broadcast %62 : f32 to vector<16x128xf32>
    %64 = arith.mulf %63, %29 : vector<16x128xf32>
    %65 = arith.addf %53, %64 : vector<16x128xf32>
    %c0_26 = arith.constant 0 : index
    %c0_27 = arith.constant 0 : index
    %c1_28 = arith.constant 1 : index
    %c0_29 = arith.constant 0 : index
    %66 = vector.load %arg1[%c0_26, %c0_27, %c1_28, %c0_29] : memref<1x3x18x128xf32, #tpu.memory_space<vmem>>, vector<1x1x16x128xf32>
    %67 = vector.shape_cast %66 : vector<1x1x16x128xf32> to vector<16x128xf32>
    %c1_i32_30 = arith.constant 1 : i32
    %68 = tpu.dynamic_rotate %67 by %c1_i32_30 dim 1 : vector<16x128xf32>, i32 -> vector<16x128xf32>
    %c127_i32_31 = arith.constant 127 : i32
    %69 = tpu.dynamic_rotate %67 by %c127_i32_31 dim 1 : vector<16x128xf32>, i32 -> vector<16x128xf32>
    %c3 = arith.constant 3 : index
    %70 = memref.load %arg3[%c3] : memref<81xf32, #tpu.memory_space<smem>>
    %71 = vector.broadcast %70 : f32 to vector<16x128xf32>
    %72 = arith.mulf %71, %68 : vector<16x128xf32>
    %73 = arith.addf %57, %72 : vector<16x128xf32>
    %c30 = arith.constant 30 : index
    %74 = memref.load %arg3[%c30] : memref<81xf32, #tpu.memory_space<smem>>
    %75 = vector.broadcast %74 : f32 to vector<16x128xf32>
    %76 = arith.mulf %75, %68 : vector<16x128xf32>
    %77 = arith.addf %61, %76 : vector<16x128xf32>
    %c57 = arith.constant 57 : index
    %78 = memref.load %arg3[%c57] : memref<81xf32, #tpu.memory_space<smem>>
    %79 = vector.broadcast %78 : f32 to vector<16x128xf32>
    %80 = arith.mulf %79, %68 : vector<16x128xf32>
    %81 = arith.addf %65, %80 : vector<16x128xf32>
    %c4 = arith.constant 4 : index
    %82 = memref.load %arg3[%c4] : memref<81xf32, #tpu.memory_space<smem>>
    %83 = vector.broadcast %82 : f32 to vector<16x128xf32>
    %84 = arith.mulf %83, %67 : vector<16x128xf32>
    %85 = arith.addf %73, %84 : vector<16x128xf32>
    %c31 = arith.constant 31 : index
    %86 = memref.load %arg3[%c31] : memref<81xf32, #tpu.memory_space<smem>>
    %87 = vector.broadcast %86 : f32 to vector<16x128xf32>
    %88 = arith.mulf %87, %67 : vector<16x128xf32>
    %89 = arith.addf %77, %88 : vector<16x128xf32>
    %c58 = arith.constant 58 : index
    %90 = memref.load %arg3[%c58] : memref<81xf32, #tpu.memory_space<smem>>
    %91 = vector.broadcast %90 : f32 to vector<16x128xf32>
    %92 = arith.mulf %91, %67 : vector<16x128xf32>
    %93 = arith.addf %81, %92 : vector<16x128xf32>
    %c5 = arith.constant 5 : index
    %94 = memref.load %arg3[%c5] : memref<81xf32, #tpu.memory_space<smem>>
    %95 = vector.broadcast %94 : f32 to vector<16x128xf32>
    %96 = arith.mulf %95, %69 : vector<16x128xf32>
    %97 = arith.addf %85, %96 : vector<16x128xf32>
    %c32 = arith.constant 32 : index
    %98 = memref.load %arg3[%c32] : memref<81xf32, #tpu.memory_space<smem>>
    %99 = vector.broadcast %98 : f32 to vector<16x128xf32>
    %100 = arith.mulf %99, %69 : vector<16x128xf32>
    %101 = arith.addf %89, %100 : vector<16x128xf32>
    %c59 = arith.constant 59 : index
    %102 = memref.load %arg3[%c59] : memref<81xf32, #tpu.memory_space<smem>>
    %103 = vector.broadcast %102 : f32 to vector<16x128xf32>
    %104 = arith.mulf %103, %69 : vector<16x128xf32>
    %105 = arith.addf %93, %104 : vector<16x128xf32>
    %c0_32 = arith.constant 0 : index
    %c0_33 = arith.constant 0 : index
    %c2_34 = arith.constant 2 : index
    %c0_35 = arith.constant 0 : index
    %106 = vector.load %arg1[%c0_32, %c0_33, %c2_34, %c0_35] : memref<1x3x18x128xf32, #tpu.memory_space<vmem>>, vector<1x1x16x128xf32>
    %107 = vector.shape_cast %106 : vector<1x1x16x128xf32> to vector<16x128xf32>
    %c1_i32_36 = arith.constant 1 : i32
    %108 = tpu.dynamic_rotate %107 by %c1_i32_36 dim 1 : vector<16x128xf32>, i32 -> vector<16x128xf32>
    %c127_i32_37 = arith.constant 127 : i32
    %109 = tpu.dynamic_rotate %107 by %c127_i32_37 dim 1 : vector<16x128xf32>, i32 -> vector<16x128xf32>
    %c6 = arith.constant 6 : index
    %110 = memref.load %arg3[%c6] : memref<81xf32, #tpu.memory_space<smem>>
    %111 = vector.broadcast %110 : f32 to vector<16x128xf32>
    %112 = arith.mulf %111, %108 : vector<16x128xf32>
    %113 = arith.addf %97, %112 : vector<16x128xf32>
    %c33 = arith.constant 33 : index
    %114 = memref.load %arg3[%c33] : memref<81xf32, #tpu.memory_space<smem>>
    %115 = vector.broadcast %114 : f32 to vector<16x128xf32>
    %116 = arith.mulf %115, %108 : vector<16x128xf32>
    %117 = arith.addf %101, %116 : vector<16x128xf32>
    %c60 = arith.constant 60 : index
    %118 = memref.load %arg3[%c60] : memref<81xf32, #tpu.memory_space<smem>>
    %119 = vector.broadcast %118 : f32 to vector<16x128xf32>
    %120 = arith.mulf %119, %108 : vector<16x128xf32>
    %121 = arith.addf %105, %120 : vector<16x128xf32>
    %c7 = arith.constant 7 : index
    %122 = memref.load %arg3[%c7] : memref<81xf32, #tpu.memory_space<smem>>
    %123 = vector.broadcast %122 : f32 to vector<16x128xf32>
    %124 = arith.mulf %123, %107 : vector<16x128xf32>
    %125 = arith.addf %113, %124 : vector<16x128xf32>
    %c34 = arith.constant 34 : index
    %126 = memref.load %arg3[%c34] : memref<81xf32, #tpu.memory_space<smem>>
    %127 = vector.broadcast %126 : f32 to vector<16x128xf32>
    %128 = arith.mulf %127, %107 : vector<16x128xf32>
    %129 = arith.addf %117, %128 : vector<16x128xf32>
    %c61 = arith.constant 61 : index
    %130 = memref.load %arg3[%c61] : memref<81xf32, #tpu.memory_space<smem>>
    %131 = vector.broadcast %130 : f32 to vector<16x128xf32>
    %132 = arith.mulf %131, %107 : vector<16x128xf32>
    %133 = arith.addf %121, %132 : vector<16x128xf32>
    %c8 = arith.constant 8 : index
    %134 = memref.load %arg3[%c8] : memref<81xf32, #tpu.memory_space<smem>>
    %135 = vector.broadcast %134 : f32 to vector<16x128xf32>
    %136 = arith.mulf %135, %109 : vector<16x128xf32>
    %137 = arith.addf %125, %136 : vector<16x128xf32>
    %c35 = arith.constant 35 : index
    %138 = memref.load %arg3[%c35] : memref<81xf32, #tpu.memory_space<smem>>
    %139 = vector.broadcast %138 : f32 to vector<16x128xf32>
    %140 = arith.mulf %139, %109 : vector<16x128xf32>
    %141 = arith.addf %129, %140 : vector<16x128xf32>
    %c62 = arith.constant 62 : index
    %142 = memref.load %arg3[%c62] : memref<81xf32, #tpu.memory_space<smem>>
    %143 = vector.broadcast %142 : f32 to vector<16x128xf32>
    %144 = arith.mulf %143, %109 : vector<16x128xf32>
    %145 = arith.addf %133, %144 : vector<16x128xf32>
    %c0_38 = arith.constant 0 : index
    %c1_39 = arith.constant 1 : index
    %c0_40 = arith.constant 0 : index
    %c0_41 = arith.constant 0 : index
    %146 = vector.load %arg1[%c0_38, %c1_39, %c0_40, %c0_41] : memref<1x3x18x128xf32, #tpu.memory_space<vmem>>, vector<1x1x16x128xf32>
    %147 = vector.shape_cast %146 : vector<1x1x16x128xf32> to vector<16x128xf32>
    %c1_i32_42 = arith.constant 1 : i32
    %148 = tpu.dynamic_rotate %147 by %c1_i32_42 dim 1 : vector<16x128xf32>, i32 -> vector<16x128xf32>
    %c127_i32_43 = arith.constant 127 : i32
    %149 = tpu.dynamic_rotate %147 by %c127_i32_43 dim 1 : vector<16x128xf32>, i32 -> vector<16x128xf32>
    %c9 = arith.constant 9 : index
    %150 = memref.load %arg3[%c9] : memref<81xf32, #tpu.memory_space<smem>>
    %151 = vector.broadcast %150 : f32 to vector<16x128xf32>
    %152 = arith.mulf %151, %148 : vector<16x128xf32>
    %153 = arith.addf %137, %152 : vector<16x128xf32>
    %c36 = arith.constant 36 : index
    %154 = memref.load %arg3[%c36] : memref<81xf32, #tpu.memory_space<smem>>
    %155 = vector.broadcast %154 : f32 to vector<16x128xf32>
    %156 = arith.mulf %155, %148 : vector<16x128xf32>
    %157 = arith.addf %141, %156 : vector<16x128xf32>
    %c63 = arith.constant 63 : index
    %158 = memref.load %arg3[%c63] : memref<81xf32, #tpu.memory_space<smem>>
    %159 = vector.broadcast %158 : f32 to vector<16x128xf32>
    %160 = arith.mulf %159, %148 : vector<16x128xf32>
    %161 = arith.addf %145, %160 : vector<16x128xf32>
    %c10 = arith.constant 10 : index
    %162 = memref.load %arg3[%c10] : memref<81xf32, #tpu.memory_space<smem>>
    %163 = vector.broadcast %162 : f32 to vector<16x128xf32>
    %164 = arith.mulf %163, %147 : vector<16x128xf32>
    %165 = arith.addf %153, %164 : vector<16x128xf32>
    %c37 = arith.constant 37 : index
    %166 = memref.load %arg3[%c37] : memref<81xf32, #tpu.memory_space<smem>>
    %167 = vector.broadcast %166 : f32 to vector<16x128xf32>
    %168 = arith.mulf %167, %147 : vector<16x128xf32>
    %169 = arith.addf %157, %168 : vector<16x128xf32>
    %c64 = arith.constant 64 : index
    %170 = memref.load %arg3[%c64] : memref<81xf32, #tpu.memory_space<smem>>
    %171 = vector.broadcast %170 : f32 to vector<16x128xf32>
    %172 = arith.mulf %171, %147 : vector<16x128xf32>
    %173 = arith.addf %161, %172 : vector<16x128xf32>
    %c11 = arith.constant 11 : index
    %174 = memref.load %arg3[%c11] : memref<81xf32, #tpu.memory_space<smem>>
    %175 = vector.broadcast %174 : f32 to vector<16x128xf32>
    %176 = arith.mulf %175, %149 : vector<16x128xf32>
    %177 = arith.addf %165, %176 : vector<16x128xf32>
    %c38 = arith.constant 38 : index
    %178 = memref.load %arg3[%c38] : memref<81xf32, #tpu.memory_space<smem>>
    %179 = vector.broadcast %178 : f32 to vector<16x128xf32>
    %180 = arith.mulf %179, %149 : vector<16x128xf32>
    %181 = arith.addf %169, %180 : vector<16x128xf32>
    %c65 = arith.constant 65 : index
    %182 = memref.load %arg3[%c65] : memref<81xf32, #tpu.memory_space<smem>>
    %183 = vector.broadcast %182 : f32 to vector<16x128xf32>
    %184 = arith.mulf %183, %149 : vector<16x128xf32>
    %185 = arith.addf %173, %184 : vector<16x128xf32>
    %c0_44 = arith.constant 0 : index
    %c1_45 = arith.constant 1 : index
    %c1_46 = arith.constant 1 : index
    %c0_47 = arith.constant 0 : index
    %186 = vector.load %arg1[%c0_44, %c1_45, %c1_46, %c0_47] : memref<1x3x18x128xf32, #tpu.memory_space<vmem>>, vector<1x1x16x128xf32>
    %187 = vector.shape_cast %186 : vector<1x1x16x128xf32> to vector<16x128xf32>
    %c1_i32_48 = arith.constant 1 : i32
    %188 = tpu.dynamic_rotate %187 by %c1_i32_48 dim 1 : vector<16x128xf32>, i32 -> vector<16x128xf32>
    %c127_i32_49 = arith.constant 127 : i32
    %189 = tpu.dynamic_rotate %187 by %c127_i32_49 dim 1 : vector<16x128xf32>, i32 -> vector<16x128xf32>
    %c12 = arith.constant 12 : index
    %190 = memref.load %arg3[%c12] : memref<81xf32, #tpu.memory_space<smem>>
    %191 = vector.broadcast %190 : f32 to vector<16x128xf32>
    %192 = arith.mulf %191, %188 : vector<16x128xf32>
    %193 = arith.addf %177, %192 : vector<16x128xf32>
    %c39 = arith.constant 39 : index
    %194 = memref.load %arg3[%c39] : memref<81xf32, #tpu.memory_space<smem>>
    %195 = vector.broadcast %194 : f32 to vector<16x128xf32>
    %196 = arith.mulf %195, %188 : vector<16x128xf32>
    %197 = arith.addf %181, %196 : vector<16x128xf32>
    %c66 = arith.constant 66 : index
    %198 = memref.load %arg3[%c66] : memref<81xf32, #tpu.memory_space<smem>>
    %199 = vector.broadcast %198 : f32 to vector<16x128xf32>
    %200 = arith.mulf %199, %188 : vector<16x128xf32>
    %201 = arith.addf %185, %200 : vector<16x128xf32>
    %c13 = arith.constant 13 : index
    %202 = memref.load %arg3[%c13] : memref<81xf32, #tpu.memory_space<smem>>
    %203 = vector.broadcast %202 : f32 to vector<16x128xf32>
    %204 = arith.mulf %203, %187 : vector<16x128xf32>
    %205 = arith.addf %193, %204 : vector<16x128xf32>
    %c40 = arith.constant 40 : index
    %206 = memref.load %arg3[%c40] : memref<81xf32, #tpu.memory_space<smem>>
    %207 = vector.broadcast %206 : f32 to vector<16x128xf32>
    %208 = arith.mulf %207, %187 : vector<16x128xf32>
    %209 = arith.addf %197, %208 : vector<16x128xf32>
    %c67 = arith.constant 67 : index
    %210 = memref.load %arg3[%c67] : memref<81xf32, #tpu.memory_space<smem>>
    %211 = vector.broadcast %210 : f32 to vector<16x128xf32>
    %212 = arith.mulf %211, %187 : vector<16x128xf32>
    %213 = arith.addf %201, %212 : vector<16x128xf32>
    %c14 = arith.constant 14 : index
    %214 = memref.load %arg3[%c14] : memref<81xf32, #tpu.memory_space<smem>>
    %215 = vector.broadcast %214 : f32 to vector<16x128xf32>
    %216 = arith.mulf %215, %189 : vector<16x128xf32>
    %217 = arith.addf %205, %216 : vector<16x128xf32>
    %c41 = arith.constant 41 : index
    %218 = memref.load %arg3[%c41] : memref<81xf32, #tpu.memory_space<smem>>
    %219 = vector.broadcast %218 : f32 to vector<16x128xf32>
    %220 = arith.mulf %219, %189 : vector<16x128xf32>
    %221 = arith.addf %209, %220 : vector<16x128xf32>
    %c68 = arith.constant 68 : index
    %222 = memref.load %arg3[%c68] : memref<81xf32, #tpu.memory_space<smem>>
    %223 = vector.broadcast %222 : f32 to vector<16x128xf32>
    %224 = arith.mulf %223, %189 : vector<16x128xf32>
    %225 = arith.addf %213, %224 : vector<16x128xf32>
    %c0_50 = arith.constant 0 : index
    %c1_51 = arith.constant 1 : index
    %c2_52 = arith.constant 2 : index
    %c0_53 = arith.constant 0 : index
    %226 = vector.load %arg1[%c0_50, %c1_51, %c2_52, %c0_53] : memref<1x3x18x128xf32, #tpu.memory_space<vmem>>, vector<1x1x16x128xf32>
    %227 = vector.shape_cast %226 : vector<1x1x16x128xf32> to vector<16x128xf32>
    %c1_i32_54 = arith.constant 1 : i32
    %228 = tpu.dynamic_rotate %227 by %c1_i32_54 dim 1 : vector<16x128xf32>, i32 -> vector<16x128xf32>
    %c127_i32_55 = arith.constant 127 : i32
    %229 = tpu.dynamic_rotate %227 by %c127_i32_55 dim 1 : vector<16x128xf32>, i32 -> vector<16x128xf32>
    %c15 = arith.constant 15 : index
    %230 = memref.load %arg3[%c15] : memref<81xf32, #tpu.memory_space<smem>>
    %231 = vector.broadcast %230 : f32 to vector<16x128xf32>
    %232 = arith.mulf %231, %228 : vector<16x128xf32>
    %233 = arith.addf %217, %232 : vector<16x128xf32>
    %c42 = arith.constant 42 : index
    %234 = memref.load %arg3[%c42] : memref<81xf32, #tpu.memory_space<smem>>
    %235 = vector.broadcast %234 : f32 to vector<16x128xf32>
    %236 = arith.mulf %235, %228 : vector<16x128xf32>
    %237 = arith.addf %221, %236 : vector<16x128xf32>
    %c69 = arith.constant 69 : index
    %238 = memref.load %arg3[%c69] : memref<81xf32, #tpu.memory_space<smem>>
    %239 = vector.broadcast %238 : f32 to vector<16x128xf32>
    %240 = arith.mulf %239, %228 : vector<16x128xf32>
    %241 = arith.addf %225, %240 : vector<16x128xf32>
    %c16 = arith.constant 16 : index
    %242 = memref.load %arg3[%c16] : memref<81xf32, #tpu.memory_space<smem>>
    %243 = vector.broadcast %242 : f32 to vector<16x128xf32>
    %244 = arith.mulf %243, %227 : vector<16x128xf32>
    %245 = arith.addf %233, %244 : vector<16x128xf32>
    %c43 = arith.constant 43 : index
    %246 = memref.load %arg3[%c43] : memref<81xf32, #tpu.memory_space<smem>>
    %247 = vector.broadcast %246 : f32 to vector<16x128xf32>
    %248 = arith.mulf %247, %227 : vector<16x128xf32>
    %249 = arith.addf %237, %248 : vector<16x128xf32>
    %c70 = arith.constant 70 : index
    %250 = memref.load %arg3[%c70] : memref<81xf32, #tpu.memory_space<smem>>
    %251 = vector.broadcast %250 : f32 to vector<16x128xf32>
    %252 = arith.mulf %251, %227 : vector<16x128xf32>
    %253 = arith.addf %241, %252 : vector<16x128xf32>
    %c17_56 = arith.constant 17 : index
    %254 = memref.load %arg3[%c17_56] : memref<81xf32, #tpu.memory_space<smem>>
    %255 = vector.broadcast %254 : f32 to vector<16x128xf32>
    %256 = arith.mulf %255, %229 : vector<16x128xf32>
    %257 = arith.addf %245, %256 : vector<16x128xf32>
    %c44 = arith.constant 44 : index
    %258 = memref.load %arg3[%c44] : memref<81xf32, #tpu.memory_space<smem>>
    %259 = vector.broadcast %258 : f32 to vector<16x128xf32>
    %260 = arith.mulf %259, %229 : vector<16x128xf32>
    %261 = arith.addf %249, %260 : vector<16x128xf32>
    %c71 = arith.constant 71 : index
    %262 = memref.load %arg3[%c71] : memref<81xf32, #tpu.memory_space<smem>>
    %263 = vector.broadcast %262 : f32 to vector<16x128xf32>
    %264 = arith.mulf %263, %229 : vector<16x128xf32>
    %265 = arith.addf %253, %264 : vector<16x128xf32>
    %c0_57 = arith.constant 0 : index
    %c2_58 = arith.constant 2 : index
    %c0_59 = arith.constant 0 : index
    %c0_60 = arith.constant 0 : index
    %266 = vector.load %arg1[%c0_57, %c2_58, %c0_59, %c0_60] : memref<1x3x18x128xf32, #tpu.memory_space<vmem>>, vector<1x1x16x128xf32>
    %267 = vector.shape_cast %266 : vector<1x1x16x128xf32> to vector<16x128xf32>
    %c1_i32_61 = arith.constant 1 : i32
    %268 = tpu.dynamic_rotate %267 by %c1_i32_61 dim 1 : vector<16x128xf32>, i32 -> vector<16x128xf32>
    %c127_i32_62 = arith.constant 127 : i32
    %269 = tpu.dynamic_rotate %267 by %c127_i32_62 dim 1 : vector<16x128xf32>, i32 -> vector<16x128xf32>
    %c18 = arith.constant 18 : index
    %270 = memref.load %arg3[%c18] : memref<81xf32, #tpu.memory_space<smem>>
    %271 = vector.broadcast %270 : f32 to vector<16x128xf32>
    %272 = arith.mulf %271, %268 : vector<16x128xf32>
    %273 = arith.addf %257, %272 : vector<16x128xf32>
    %c45 = arith.constant 45 : index
    %274 = memref.load %arg3[%c45] : memref<81xf32, #tpu.memory_space<smem>>
    %275 = vector.broadcast %274 : f32 to vector<16x128xf32>
    %276 = arith.mulf %275, %268 : vector<16x128xf32>
    %277 = arith.addf %261, %276 : vector<16x128xf32>
    %c72 = arith.constant 72 : index
    %278 = memref.load %arg3[%c72] : memref<81xf32, #tpu.memory_space<smem>>
    %279 = vector.broadcast %278 : f32 to vector<16x128xf32>
    %280 = arith.mulf %279, %268 : vector<16x128xf32>
    %281 = arith.addf %265, %280 : vector<16x128xf32>
    %c19 = arith.constant 19 : index
    %282 = memref.load %arg3[%c19] : memref<81xf32, #tpu.memory_space<smem>>
    %283 = vector.broadcast %282 : f32 to vector<16x128xf32>
    %284 = arith.mulf %283, %267 : vector<16x128xf32>
    %285 = arith.addf %273, %284 : vector<16x128xf32>
    %c46 = arith.constant 46 : index
    %286 = memref.load %arg3[%c46] : memref<81xf32, #tpu.memory_space<smem>>
    %287 = vector.broadcast %286 : f32 to vector<16x128xf32>
    %288 = arith.mulf %287, %267 : vector<16x128xf32>
    %289 = arith.addf %277, %288 : vector<16x128xf32>
    %c73 = arith.constant 73 : index
    %290 = memref.load %arg3[%c73] : memref<81xf32, #tpu.memory_space<smem>>
    %291 = vector.broadcast %290 : f32 to vector<16x128xf32>
    %292 = arith.mulf %291, %267 : vector<16x128xf32>
    %293 = arith.addf %281, %292 : vector<16x128xf32>
    %c20 = arith.constant 20 : index
    %294 = memref.load %arg3[%c20] : memref<81xf32, #tpu.memory_space<smem>>
    %295 = vector.broadcast %294 : f32 to vector<16x128xf32>
    %296 = arith.mulf %295, %269 : vector<16x128xf32>
    %297 = arith.addf %285, %296 : vector<16x128xf32>
    %c47 = arith.constant 47 : index
    %298 = memref.load %arg3[%c47] : memref<81xf32, #tpu.memory_space<smem>>
    %299 = vector.broadcast %298 : f32 to vector<16x128xf32>
    %300 = arith.mulf %299, %269 : vector<16x128xf32>
    %301 = arith.addf %289, %300 : vector<16x128xf32>
    %c74 = arith.constant 74 : index
    %302 = memref.load %arg3[%c74] : memref<81xf32, #tpu.memory_space<smem>>
    %303 = vector.broadcast %302 : f32 to vector<16x128xf32>
    %304 = arith.mulf %303, %269 : vector<16x128xf32>
    %305 = arith.addf %293, %304 : vector<16x128xf32>
    %c0_63 = arith.constant 0 : index
    %c2_64 = arith.constant 2 : index
    %c1_65 = arith.constant 1 : index
    %c0_66 = arith.constant 0 : index
    %306 = vector.load %arg1[%c0_63, %c2_64, %c1_65, %c0_66] : memref<1x3x18x128xf32, #tpu.memory_space<vmem>>, vector<1x1x16x128xf32>
    %307 = vector.shape_cast %306 : vector<1x1x16x128xf32> to vector<16x128xf32>
    %c1_i32_67 = arith.constant 1 : i32
    %308 = tpu.dynamic_rotate %307 by %c1_i32_67 dim 1 : vector<16x128xf32>, i32 -> vector<16x128xf32>
    %c127_i32_68 = arith.constant 127 : i32
    %309 = tpu.dynamic_rotate %307 by %c127_i32_68 dim 1 : vector<16x128xf32>, i32 -> vector<16x128xf32>
    %c21 = arith.constant 21 : index
    %310 = memref.load %arg3[%c21] : memref<81xf32, #tpu.memory_space<smem>>
    %311 = vector.broadcast %310 : f32 to vector<16x128xf32>
    %312 = arith.mulf %311, %308 : vector<16x128xf32>
    %313 = arith.addf %297, %312 : vector<16x128xf32>
    %c48 = arith.constant 48 : index
    %314 = memref.load %arg3[%c48] : memref<81xf32, #tpu.memory_space<smem>>
    %315 = vector.broadcast %314 : f32 to vector<16x128xf32>
    %316 = arith.mulf %315, %308 : vector<16x128xf32>
    %317 = arith.addf %301, %316 : vector<16x128xf32>
    %c75 = arith.constant 75 : index
    %318 = memref.load %arg3[%c75] : memref<81xf32, #tpu.memory_space<smem>>
    %319 = vector.broadcast %318 : f32 to vector<16x128xf32>
    %320 = arith.mulf %319, %308 : vector<16x128xf32>
    %321 = arith.addf %305, %320 : vector<16x128xf32>
    %c22 = arith.constant 22 : index
    %322 = memref.load %arg3[%c22] : memref<81xf32, #tpu.memory_space<smem>>
    %323 = vector.broadcast %322 : f32 to vector<16x128xf32>
    %324 = arith.mulf %323, %307 : vector<16x128xf32>
    %325 = arith.addf %313, %324 : vector<16x128xf32>
    %c49 = arith.constant 49 : index
    %326 = memref.load %arg3[%c49] : memref<81xf32, #tpu.memory_space<smem>>
    %327 = vector.broadcast %326 : f32 to vector<16x128xf32>
    %328 = arith.mulf %327, %307 : vector<16x128xf32>
    %329 = arith.addf %317, %328 : vector<16x128xf32>
    %c76 = arith.constant 76 : index
    %330 = memref.load %arg3[%c76] : memref<81xf32, #tpu.memory_space<smem>>
    %331 = vector.broadcast %330 : f32 to vector<16x128xf32>
    %332 = arith.mulf %331, %307 : vector<16x128xf32>
    %333 = arith.addf %321, %332 : vector<16x128xf32>
    %c23 = arith.constant 23 : index
    %334 = memref.load %arg3[%c23] : memref<81xf32, #tpu.memory_space<smem>>
    %335 = vector.broadcast %334 : f32 to vector<16x128xf32>
    %336 = arith.mulf %335, %309 : vector<16x128xf32>
    %337 = arith.addf %325, %336 : vector<16x128xf32>
    %c50 = arith.constant 50 : index
    %338 = memref.load %arg3[%c50] : memref<81xf32, #tpu.memory_space<smem>>
    %339 = vector.broadcast %338 : f32 to vector<16x128xf32>
    %340 = arith.mulf %339, %309 : vector<16x128xf32>
    %341 = arith.addf %329, %340 : vector<16x128xf32>
    %c77 = arith.constant 77 : index
    %342 = memref.load %arg3[%c77] : memref<81xf32, #tpu.memory_space<smem>>
    %343 = vector.broadcast %342 : f32 to vector<16x128xf32>
    %344 = arith.mulf %343, %309 : vector<16x128xf32>
    %345 = arith.addf %333, %344 : vector<16x128xf32>
    %c0_69 = arith.constant 0 : index
    %c2_70 = arith.constant 2 : index
    %c2_71 = arith.constant 2 : index
    %c0_72 = arith.constant 0 : index
    %346 = vector.load %arg1[%c0_69, %c2_70, %c2_71, %c0_72] : memref<1x3x18x128xf32, #tpu.memory_space<vmem>>, vector<1x1x16x128xf32>
    %347 = vector.shape_cast %346 : vector<1x1x16x128xf32> to vector<16x128xf32>
    %c1_i32_73 = arith.constant 1 : i32
    %348 = tpu.dynamic_rotate %347 by %c1_i32_73 dim 1 : vector<16x128xf32>, i32 -> vector<16x128xf32>
    %c127_i32_74 = arith.constant 127 : i32
    %349 = tpu.dynamic_rotate %347 by %c127_i32_74 dim 1 : vector<16x128xf32>, i32 -> vector<16x128xf32>
    %c24 = arith.constant 24 : index
    %350 = memref.load %arg3[%c24] : memref<81xf32, #tpu.memory_space<smem>>
    %351 = vector.broadcast %350 : f32 to vector<16x128xf32>
    %352 = arith.mulf %351, %348 : vector<16x128xf32>
    %353 = arith.addf %337, %352 : vector<16x128xf32>
    %c51 = arith.constant 51 : index
    %354 = memref.load %arg3[%c51] : memref<81xf32, #tpu.memory_space<smem>>
    %355 = vector.broadcast %354 : f32 to vector<16x128xf32>
    %356 = arith.mulf %355, %348 : vector<16x128xf32>
    %357 = arith.addf %341, %356 : vector<16x128xf32>
    %c78 = arith.constant 78 : index
    %358 = memref.load %arg3[%c78] : memref<81xf32, #tpu.memory_space<smem>>
    %359 = vector.broadcast %358 : f32 to vector<16x128xf32>
    %360 = arith.mulf %359, %348 : vector<16x128xf32>
    %361 = arith.addf %345, %360 : vector<16x128xf32>
    %c25 = arith.constant 25 : index
    %362 = memref.load %arg3[%c25] : memref<81xf32, #tpu.memory_space<smem>>
    %363 = vector.broadcast %362 : f32 to vector<16x128xf32>
    %364 = arith.mulf %363, %347 : vector<16x128xf32>
    %365 = arith.addf %353, %364 : vector<16x128xf32>
    %c52 = arith.constant 52 : index
    %366 = memref.load %arg3[%c52] : memref<81xf32, #tpu.memory_space<smem>>
    %367 = vector.broadcast %366 : f32 to vector<16x128xf32>
    %368 = arith.mulf %367, %347 : vector<16x128xf32>
    %369 = arith.addf %357, %368 : vector<16x128xf32>
    %c79 = arith.constant 79 : index
    %370 = memref.load %arg3[%c79] : memref<81xf32, #tpu.memory_space<smem>>
    %371 = vector.broadcast %370 : f32 to vector<16x128xf32>
    %372 = arith.mulf %371, %347 : vector<16x128xf32>
    %373 = arith.addf %361, %372 : vector<16x128xf32>
    %c26 = arith.constant 26 : index
    %374 = memref.load %arg3[%c26] : memref<81xf32, #tpu.memory_space<smem>>
    %375 = vector.broadcast %374 : f32 to vector<16x128xf32>
    %376 = arith.mulf %375, %349 : vector<16x128xf32>
    %377 = arith.addf %365, %376 : vector<16x128xf32>
    %c53 = arith.constant 53 : index
    %378 = memref.load %arg3[%c53] : memref<81xf32, #tpu.memory_space<smem>>
    %379 = vector.broadcast %378 : f32 to vector<16x128xf32>
    %380 = arith.mulf %379, %349 : vector<16x128xf32>
    %381 = arith.addf %369, %380 : vector<16x128xf32>
    %c80 = arith.constant 80 : index
    %382 = memref.load %arg3[%c80] : memref<81xf32, #tpu.memory_space<smem>>
    %383 = vector.broadcast %382 : f32 to vector<16x128xf32>
    %384 = arith.mulf %383, %349 : vector<16x128xf32>
    %385 = arith.addf %373, %384 : vector<16x128xf32>
    %cst_75 = arith.constant 0.000000e+00 : f32
    %386 = vector.broadcast %cst_75 : f32 to vector<16x128xf32>
    %387 = arith.maximumf %377, %386 : vector<16x128xf32>
    %388 = arith.mulf %387, %0 : vector<16x128xf32>
    %c0_76 = arith.constant 0 : index
    %c1_77 = arith.constant 1 : index
    %c0_78 = arith.constant 0 : index
    %389 = vector.load %arg8[%c0_76, %c1_77, %c0_78] : memref<3x18x128xf32, #tpu.memory_space<vmem>>, vector<1x16x128xf32>
    %390 = vector.shape_cast %389 : vector<1x16x128xf32> to vector<16x128xf32>
    %391 = vector.shape_cast %388 : vector<16x128xf32> to vector<1x16x128xf32>
    tpu.vector_store %arg8[%c0_76, %c1_77, %c0_78], %391 {strides = array<i32>} : memref<3x18x128xf32, #tpu.memory_space<vmem>>, vector<1x16x128xf32>,
    %cst_79 = arith.constant 0.000000e+00 : f32
    %392 = vector.broadcast %cst_79 : f32 to vector<16x128xf32>
    %393 = arith.maximumf %381, %392 : vector<16x128xf32>
    %394 = arith.mulf %393, %0 : vector<16x128xf32>
    %c1_80 = arith.constant 1 : index
    %c1_81 = arith.constant 1 : index
    %c0_82 = arith.constant 0 : index
    %395 = vector.load %arg8[%c1_80, %c1_81, %c0_82] : memref<3x18x128xf32, #tpu.memory_space<vmem>>, vector<1x16x128xf32>
    %396 = vector.shape_cast %395 : vector<1x16x128xf32> to vector<16x128xf32>
    %397 = vector.shape_cast %394 : vector<16x128xf32> to vector<1x16x128xf32>
    tpu.vector_store %arg8[%c1_80, %c1_81, %c0_82], %397 {strides = array<i32>} : memref<3x18x128xf32, #tpu.memory_space<vmem>>, vector<1x16x128xf32>,
    %cst_83 = arith.constant 0.000000e+00 : f32
    %398 = vector.broadcast %cst_83 : f32 to vector<16x128xf32>
    %399 = arith.maximumf %385, %398 : vector<16x128xf32>
    %400 = arith.mulf %399, %0 : vector<16x128xf32>
    %c2_84 = arith.constant 2 : index
    %c1_85 = arith.constant 1 : index
    %c0_86 = arith.constant 0 : index
    %401 = vector.load %arg8[%c2_84, %c1_85, %c0_86] : memref<3x18x128xf32, #tpu.memory_space<vmem>>, vector<1x16x128xf32>
    %402 = vector.shape_cast %401 : vector<1x16x128xf32> to vector<16x128xf32>
    %403 = vector.shape_cast %400 : vector<16x128xf32> to vector<1x16x128xf32>
    tpu.vector_store %arg8[%c2_84, %c1_85, %c0_86], %403 {strides = array<i32>} : memref<3x18x128xf32, #tpu.memory_space<vmem>>, vector<1x16x128xf32>,
    %c0_87 = arith.constant 0 : index
    %404 = memref.load %arg6[%c0_87] : memref<3xf32, #tpu.memory_space<smem>>
    %405 = vector.broadcast %404 : f32 to vector<16x128xf32>
    %c1_88 = arith.constant 1 : index
    %406 = memref.load %arg6[%c1_88] : memref<3xf32, #tpu.memory_space<smem>>
    %407 = vector.broadcast %406 : f32 to vector<16x128xf32>
    %c2_89 = arith.constant 2 : index
    %408 = memref.load %arg6[%c2_89] : memref<3xf32, #tpu.memory_space<smem>>
    %409 = vector.broadcast %408 : f32 to vector<16x128xf32>
    %c0_90 = arith.constant 0 : index
    %c0_91 = arith.constant 0 : index
    %c0_92 = arith.constant 0 : index
    %410 = vector.load %arg8[%c0_90, %c0_91, %c0_92] : memref<3x18x128xf32, #tpu.memory_space<vmem>>, vector<1x16x128xf32>
    %411 = vector.shape_cast %410 : vector<1x16x128xf32> to vector<16x128xf32>
    %c1_i32_93 = arith.constant 1 : i32
    %412 = tpu.dynamic_rotate %411 by %c1_i32_93 dim 1 : vector<16x128xf32>, i32 -> vector<16x128xf32>
    %c127_i32_94 = arith.constant 127 : i32
    %413 = tpu.dynamic_rotate %411 by %c127_i32_94 dim 1 : vector<16x128xf32>, i32 -> vector<16x128xf32>
    %c0_95 = arith.constant 0 : index
    %414 = memref.load %arg5[%c0_95] : memref<81xf32, #tpu.memory_space<smem>>
    %415 = vector.broadcast %414 : f32 to vector<16x128xf32>
    %416 = arith.mulf %415, %412 : vector<16x128xf32>
    %417 = arith.addf %405, %416 : vector<16x128xf32>
    %c27_96 = arith.constant 27 : index
    %418 = memref.load %arg5[%c27_96] : memref<81xf32, #tpu.memory_space<smem>>
    %419 = vector.broadcast %418 : f32 to vector<16x128xf32>
    %420 = arith.mulf %419, %412 : vector<16x128xf32>
    %421 = arith.addf %407, %420 : vector<16x128xf32>
    %c54_97 = arith.constant 54 : index
    %422 = memref.load %arg5[%c54_97] : memref<81xf32, #tpu.memory_space<smem>>
    %423 = vector.broadcast %422 : f32 to vector<16x128xf32>
    %424 = arith.mulf %423, %412 : vector<16x128xf32>
    %425 = arith.addf %409, %424 : vector<16x128xf32>
    %c1_98 = arith.constant 1 : index
    %426 = memref.load %arg5[%c1_98] : memref<81xf32, #tpu.memory_space<smem>>
    %427 = vector.broadcast %426 : f32 to vector<16x128xf32>
    %428 = arith.mulf %427, %411 : vector<16x128xf32>
    %429 = arith.addf %417, %428 : vector<16x128xf32>
    %c28_99 = arith.constant 28 : index
    %430 = memref.load %arg5[%c28_99] : memref<81xf32, #tpu.memory_space<smem>>
    %431 = vector.broadcast %430 : f32 to vector<16x128xf32>
    %432 = arith.mulf %431, %411 : vector<16x128xf32>
    %433 = arith.addf %421, %432 : vector<16x128xf32>
    %c55_100 = arith.constant 55 : index
    %434 = memref.load %arg5[%c55_100] : memref<81xf32, #tpu.memory_space<smem>>
    %435 = vector.broadcast %434 : f32 to vector<16x128xf32>
    %436 = arith.mulf %435, %411 : vector<16x128xf32>
    %437 = arith.addf %425, %436 : vector<16x128xf32>
    %c2_101 = arith.constant 2 : index
    %438 = memref.load %arg5[%c2_101] : memref<81xf32, #tpu.memory_space<smem>>
    %439 = vector.broadcast %438 : f32 to vector<16x128xf32>
    %440 = arith.mulf %439, %413 : vector<16x128xf32>
    %441 = arith.addf %429, %440 : vector<16x128xf32>
    %c29_102 = arith.constant 29 : index
    %442 = memref.load %arg5[%c29_102] : memref<81xf32, #tpu.memory_space<smem>>
    %443 = vector.broadcast %442 : f32 to vector<16x128xf32>
    %444 = arith.mulf %443, %413 : vector<16x128xf32>
    %445 = arith.addf %433, %444 : vector<16x128xf32>
    %c56_103 = arith.constant 56 : index
    %446 = memref.load %arg5[%c56_103] : memref<81xf32, #tpu.memory_space<smem>>
    %447 = vector.broadcast %446 : f32 to vector<16x128xf32>
    %448 = arith.mulf %447, %413 : vector<16x128xf32>
    %449 = arith.addf %437, %448 : vector<16x128xf32>
    %c0_104 = arith.constant 0 : index
    %c1_105 = arith.constant 1 : index
    %c0_106 = arith.constant 0 : index
    %450 = vector.load %arg8[%c0_104, %c1_105, %c0_106] : memref<3x18x128xf32, #tpu.memory_space<vmem>>, vector<1x16x128xf32>
    %451 = vector.shape_cast %450 : vector<1x16x128xf32> to vector<16x128xf32>
    %c1_i32_107 = arith.constant 1 : i32
    %452 = tpu.dynamic_rotate %451 by %c1_i32_107 dim 1 : vector<16x128xf32>, i32 -> vector<16x128xf32>
    %c127_i32_108 = arith.constant 127 : i32
    %453 = tpu.dynamic_rotate %451 by %c127_i32_108 dim 1 : vector<16x128xf32>, i32 -> vector<16x128xf32>
    %c3_109 = arith.constant 3 : index
    %454 = memref.load %arg5[%c3_109] : memref<81xf32, #tpu.memory_space<smem>>
    %455 = vector.broadcast %454 : f32 to vector<16x128xf32>
    %456 = arith.mulf %455, %452 : vector<16x128xf32>
    %457 = arith.addf %441, %456 : vector<16x128xf32>
    %c30_110 = arith.constant 30 : index
    %458 = memref.load %arg5[%c30_110] : memref<81xf32, #tpu.memory_space<smem>>
    %459 = vector.broadcast %458 : f32 to vector<16x128xf32>
    %460 = arith.mulf %459, %452 : vector<16x128xf32>
    %461 = arith.addf %445, %460 : vector<16x128xf32>
    %c57_111 = arith.constant 57 : index
    %462 = memref.load %arg5[%c57_111] : memref<81xf32, #tpu.memory_space<smem>>
    %463 = vector.broadcast %462 : f32 to vector<16x128xf32>
    %464 = arith.mulf %463, %452 : vector<16x128xf32>
    %465 = arith.addf %449, %464 : vector<16x128xf32>
    %c4_112 = arith.constant 4 : index
    %466 = memref.load %arg5[%c4_112] : memref<81xf32, #tpu.memory_space<smem>>
    %467 = vector.broadcast %466 : f32 to vector<16x128xf32>
    %468 = arith.mulf %467, %451 : vector<16x128xf32>
    %469 = arith.addf %457, %468 : vector<16x128xf32>
    %c31_113 = arith.constant 31 : index
    %470 = memref.load %arg5[%c31_113] : memref<81xf32, #tpu.memory_space<smem>>
    %471 = vector.broadcast %470 : f32 to vector<16x128xf32>
    %472 = arith.mulf %471, %451 : vector<16x128xf32>
    %473 = arith.addf %461, %472 : vector<16x128xf32>
    %c58_114 = arith.constant 58 : index
    %474 = memref.load %arg5[%c58_114] : memref<81xf32, #tpu.memory_space<smem>>
    %475 = vector.broadcast %474 : f32 to vector<16x128xf32>
    %476 = arith.mulf %475, %451 : vector<16x128xf32>
    %477 = arith.addf %465, %476 : vector<16x128xf32>
    %c5_115 = arith.constant 5 : index
    %478 = memref.load %arg5[%c5_115] : memref<81xf32, #tpu.memory_space<smem>>
    %479 = vector.broadcast %478 : f32 to vector<16x128xf32>
    %480 = arith.mulf %479, %453 : vector<16x128xf32>
    %481 = arith.addf %469, %480 : vector<16x128xf32>
    %c32_116 = arith.constant 32 : index
    %482 = memref.load %arg5[%c32_116] : memref<81xf32, #tpu.memory_space<smem>>
    %483 = vector.broadcast %482 : f32 to vector<16x128xf32>
    %484 = arith.mulf %483, %453 : vector<16x128xf32>
    %485 = arith.addf %473, %484 : vector<16x128xf32>
    %c59_117 = arith.constant 59 : index
    %486 = memref.load %arg5[%c59_117] : memref<81xf32, #tpu.memory_space<smem>>
    %487 = vector.broadcast %486 : f32 to vector<16x128xf32>
    %488 = arith.mulf %487, %453 : vector<16x128xf32>
    %489 = arith.addf %477, %488 : vector<16x128xf32>
    %c0_118 = arith.constant 0 : index
    %c2_119 = arith.constant 2 : index
    %c0_120 = arith.constant 0 : index
    %490 = vector.load %arg8[%c0_118, %c2_119, %c0_120] : memref<3x18x128xf32, #tpu.memory_space<vmem>>, vector<1x16x128xf32>
    %491 = vector.shape_cast %490 : vector<1x16x128xf32> to vector<16x128xf32>
    %c1_i32_121 = arith.constant 1 : i32
    %492 = tpu.dynamic_rotate %491 by %c1_i32_121 dim 1 : vector<16x128xf32>, i32 -> vector<16x128xf32>
    %c127_i32_122 = arith.constant 127 : i32
    %493 = tpu.dynamic_rotate %491 by %c127_i32_122 dim 1 : vector<16x128xf32>, i32 -> vector<16x128xf32>
    %c6_123 = arith.constant 6 : index
    %494 = memref.load %arg5[%c6_123] : memref<81xf32, #tpu.memory_space<smem>>
    %495 = vector.broadcast %494 : f32 to vector<16x128xf32>
    %496 = arith.mulf %495, %492 : vector<16x128xf32>
    %497 = arith.addf %481, %496 : vector<16x128xf32>
    %c33_124 = arith.constant 33 : index
    %498 = memref.load %arg5[%c33_124] : memref<81xf32, #tpu.memory_space<smem>>
    %499 = vector.broadcast %498 : f32 to vector<16x128xf32>
    %500 = arith.mulf %499, %492 : vector<16x128xf32>
    %501 = arith.addf %485, %500 : vector<16x128xf32>
    %c60_125 = arith.constant 60 : index
    %502 = memref.load %arg5[%c60_125] : memref<81xf32, #tpu.memory_space<smem>>
    %503 = vector.broadcast %502 : f32 to vector<16x128xf32>
    %504 = arith.mulf %503, %492 : vector<16x128xf32>
    %505 = arith.addf %489, %504 : vector<16x128xf32>
    %c7_126 = arith.constant 7 : index
    %506 = memref.load %arg5[%c7_126] : memref<81xf32, #tpu.memory_space<smem>>
    %507 = vector.broadcast %506 : f32 to vector<16x128xf32>
    %508 = arith.mulf %507, %491 : vector<16x128xf32>
    %509 = arith.addf %497, %508 : vector<16x128xf32>
    %c34_127 = arith.constant 34 : index
    %510 = memref.load %arg5[%c34_127] : memref<81xf32, #tpu.memory_space<smem>>
    %511 = vector.broadcast %510 : f32 to vector<16x128xf32>
    %512 = arith.mulf %511, %491 : vector<16x128xf32>
    %513 = arith.addf %501, %512 : vector<16x128xf32>
    %c61_128 = arith.constant 61 : index
    %514 = memref.load %arg5[%c61_128] : memref<81xf32, #tpu.memory_space<smem>>
    %515 = vector.broadcast %514 : f32 to vector<16x128xf32>
    %516 = arith.mulf %515, %491 : vector<16x128xf32>
    %517 = arith.addf %505, %516 : vector<16x128xf32>
    %c8_129 = arith.constant 8 : index
    %518 = memref.load %arg5[%c8_129] : memref<81xf32, #tpu.memory_space<smem>>
    %519 = vector.broadcast %518 : f32 to vector<16x128xf32>
    %520 = arith.mulf %519, %493 : vector<16x128xf32>
    %521 = arith.addf %509, %520 : vector<16x128xf32>
    %c35_130 = arith.constant 35 : index
    %522 = memref.load %arg5[%c35_130] : memref<81xf32, #tpu.memory_space<smem>>
    %523 = vector.broadcast %522 : f32 to vector<16x128xf32>
    %524 = arith.mulf %523, %493 : vector<16x128xf32>
    %525 = arith.addf %513, %524 : vector<16x128xf32>
    %c62_131 = arith.constant 62 : index
    %526 = memref.load %arg5[%c62_131] : memref<81xf32, #tpu.memory_space<smem>>
    %527 = vector.broadcast %526 : f32 to vector<16x128xf32>
    %528 = arith.mulf %527, %493 : vector<16x128xf32>
    %529 = arith.addf %517, %528 : vector<16x128xf32>
    %c1_132 = arith.constant 1 : index
    %c0_133 = arith.constant 0 : index
    %c0_134 = arith.constant 0 : index
    %530 = vector.load %arg8[%c1_132, %c0_133, %c0_134] : memref<3x18x128xf32, #tpu.memory_space<vmem>>, vector<1x16x128xf32>
    %531 = vector.shape_cast %530 : vector<1x16x128xf32> to vector<16x128xf32>
    %c1_i32_135 = arith.constant 1 : i32
    %532 = tpu.dynamic_rotate %531 by %c1_i32_135 dim 1 : vector<16x128xf32>, i32 -> vector<16x128xf32>
    %c127_i32_136 = arith.constant 127 : i32
    %533 = tpu.dynamic_rotate %531 by %c127_i32_136 dim 1 : vector<16x128xf32>, i32 -> vector<16x128xf32>
    %c9_137 = arith.constant 9 : index
    %534 = memref.load %arg5[%c9_137] : memref<81xf32, #tpu.memory_space<smem>>
    %535 = vector.broadcast %534 : f32 to vector<16x128xf32>
    %536 = arith.mulf %535, %532 : vector<16x128xf32>
    %537 = arith.addf %521, %536 : vector<16x128xf32>
    %c36_138 = arith.constant 36 : index
    %538 = memref.load %arg5[%c36_138] : memref<81xf32, #tpu.memory_space<smem>>
    %539 = vector.broadcast %538 : f32 to vector<16x128xf32>
    %540 = arith.mulf %539, %532 : vector<16x128xf32>
    %541 = arith.addf %525, %540 : vector<16x128xf32>
    %c63_139 = arith.constant 63 : index
    %542 = memref.load %arg5[%c63_139] : memref<81xf32, #tpu.memory_space<smem>>
    %543 = vector.broadcast %542 : f32 to vector<16x128xf32>
    %544 = arith.mulf %543, %532 : vector<16x128xf32>
    %545 = arith.addf %529, %544 : vector<16x128xf32>
    %c10_140 = arith.constant 10 : index
    %546 = memref.load %arg5[%c10_140] : memref<81xf32, #tpu.memory_space<smem>>
    %547 = vector.broadcast %546 : f32 to vector<16x128xf32>
    %548 = arith.mulf %547, %531 : vector<16x128xf32>
    %549 = arith.addf %537, %548 : vector<16x128xf32>
    %c37_141 = arith.constant 37 : index
    %550 = memref.load %arg5[%c37_141] : memref<81xf32, #tpu.memory_space<smem>>
    %551 = vector.broadcast %550 : f32 to vector<16x128xf32>
    %552 = arith.mulf %551, %531 : vector<16x128xf32>
    %553 = arith.addf %541, %552 : vector<16x128xf32>
    %c64_142 = arith.constant 64 : index
    %554 = memref.load %arg5[%c64_142] : memref<81xf32, #tpu.memory_space<smem>>
    %555 = vector.broadcast %554 : f32 to vector<16x128xf32>
    %556 = arith.mulf %555, %531 : vector<16x128xf32>
    %557 = arith.addf %545, %556 : vector<16x128xf32>
    %c11_143 = arith.constant 11 : index
    %558 = memref.load %arg5[%c11_143] : memref<81xf32, #tpu.memory_space<smem>>
    %559 = vector.broadcast %558 : f32 to vector<16x128xf32>
    %560 = arith.mulf %559, %533 : vector<16x128xf32>
    %561 = arith.addf %549, %560 : vector<16x128xf32>
    %c38_144 = arith.constant 38 : index
    %562 = memref.load %arg5[%c38_144] : memref<81xf32, #tpu.memory_space<smem>>
    %563 = vector.broadcast %562 : f32 to vector<16x128xf32>
    %564 = arith.mulf %563, %533 : vector<16x128xf32>
    %565 = arith.addf %553, %564 : vector<16x128xf32>
    %c65_145 = arith.constant 65 : index
    %566 = memref.load %arg5[%c65_145] : memref<81xf32, #tpu.memory_space<smem>>
    %567 = vector.broadcast %566 : f32 to vector<16x128xf32>
    %568 = arith.mulf %567, %533 : vector<16x128xf32>
    %569 = arith.addf %557, %568 : vector<16x128xf32>
    %c1_146 = arith.constant 1 : index
    %c1_147 = arith.constant 1 : index
    %c0_148 = arith.constant 0 : index
    %570 = vector.load %arg8[%c1_146, %c1_147, %c0_148] : memref<3x18x128xf32, #tpu.memory_space<vmem>>, vector<1x16x128xf32>
    %571 = vector.shape_cast %570 : vector<1x16x128xf32> to vector<16x128xf32>
    %c1_i32_149 = arith.constant 1 : i32
    %572 = tpu.dynamic_rotate %571 by %c1_i32_149 dim 1 : vector<16x128xf32>, i32 -> vector<16x128xf32>
    %c127_i32_150 = arith.constant 127 : i32
    %573 = tpu.dynamic_rotate %571 by %c127_i32_150 dim 1 : vector<16x128xf32>, i32 -> vector<16x128xf32>
    %c12_151 = arith.constant 12 : index
    %574 = memref.load %arg5[%c12_151] : memref<81xf32, #tpu.memory_space<smem>>
    %575 = vector.broadcast %574 : f32 to vector<16x128xf32>
    %576 = arith.mulf %575, %572 : vector<16x128xf32>
    %577 = arith.addf %561, %576 : vector<16x128xf32>
    %c39_152 = arith.constant 39 : index
    %578 = memref.load %arg5[%c39_152] : memref<81xf32, #tpu.memory_space<smem>>
    %579 = vector.broadcast %578 : f32 to vector<16x128xf32>
    %580 = arith.mulf %579, %572 : vector<16x128xf32>
    %581 = arith.addf %565, %580 : vector<16x128xf32>
    %c66_153 = arith.constant 66 : index
    %582 = memref.load %arg5[%c66_153] : memref<81xf32, #tpu.memory_space<smem>>
    %583 = vector.broadcast %582 : f32 to vector<16x128xf32>
    %584 = arith.mulf %583, %572 : vector<16x128xf32>
    %585 = arith.addf %569, %584 : vector<16x128xf32>
    %c13_154 = arith.constant 13 : index
    %586 = memref.load %arg5[%c13_154] : memref<81xf32, #tpu.memory_space<smem>>
    %587 = vector.broadcast %586 : f32 to vector<16x128xf32>
    %588 = arith.mulf %587, %571 : vector<16x128xf32>
    %589 = arith.addf %577, %588 : vector<16x128xf32>
    %c40_155 = arith.constant 40 : index
    %590 = memref.load %arg5[%c40_155] : memref<81xf32, #tpu.memory_space<smem>>
    %591 = vector.broadcast %590 : f32 to vector<16x128xf32>
    %592 = arith.mulf %591, %571 : vector<16x128xf32>
    %593 = arith.addf %581, %592 : vector<16x128xf32>
    %c67_156 = arith.constant 67 : index
    %594 = memref.load %arg5[%c67_156] : memref<81xf32, #tpu.memory_space<smem>>
    %595 = vector.broadcast %594 : f32 to vector<16x128xf32>
    %596 = arith.mulf %595, %571 : vector<16x128xf32>
    %597 = arith.addf %585, %596 : vector<16x128xf32>
    %c14_157 = arith.constant 14 : index
    %598 = memref.load %arg5[%c14_157] : memref<81xf32, #tpu.memory_space<smem>>
    %599 = vector.broadcast %598 : f32 to vector<16x128xf32>
    %600 = arith.mulf %599, %573 : vector<16x128xf32>
    %601 = arith.addf %589, %600 : vector<16x128xf32>
    %c41_158 = arith.constant 41 : index
    %602 = memref.load %arg5[%c41_158] : memref<81xf32, #tpu.memory_space<smem>>
    %603 = vector.broadcast %602 : f32 to vector<16x128xf32>
    %604 = arith.mulf %603, %573 : vector<16x128xf32>
    %605 = arith.addf %593, %604 : vector<16x128xf32>
    %c68_159 = arith.constant 68 : index
    %606 = memref.load %arg5[%c68_159] : memref<81xf32, #tpu.memory_space<smem>>
    %607 = vector.broadcast %606 : f32 to vector<16x128xf32>
    %608 = arith.mulf %607, %573 : vector<16x128xf32>
    %609 = arith.addf %597, %608 : vector<16x128xf32>
    %c1_160 = arith.constant 1 : index
    %c2_161 = arith.constant 2 : index
    %c0_162 = arith.constant 0 : index
    %610 = vector.load %arg8[%c1_160, %c2_161, %c0_162] : memref<3x18x128xf32, #tpu.memory_space<vmem>>, vector<1x16x128xf32>
    %611 = vector.shape_cast %610 : vector<1x16x128xf32> to vector<16x128xf32>
    %c1_i32_163 = arith.constant 1 : i32
    %612 = tpu.dynamic_rotate %611 by %c1_i32_163 dim 1 : vector<16x128xf32>, i32 -> vector<16x128xf32>
    %c127_i32_164 = arith.constant 127 : i32
    %613 = tpu.dynamic_rotate %611 by %c127_i32_164 dim 1 : vector<16x128xf32>, i32 -> vector<16x128xf32>
    %c15_165 = arith.constant 15 : index
    %614 = memref.load %arg5[%c15_165] : memref<81xf32, #tpu.memory_space<smem>>
    %615 = vector.broadcast %614 : f32 to vector<16x128xf32>
    %616 = arith.mulf %615, %612 : vector<16x128xf32>
    %617 = arith.addf %601, %616 : vector<16x128xf32>
    %c42_166 = arith.constant 42 : index
    %618 = memref.load %arg5[%c42_166] : memref<81xf32, #tpu.memory_space<smem>>
    %619 = vector.broadcast %618 : f32 to vector<16x128xf32>
    %620 = arith.mulf %619, %612 : vector<16x128xf32>
    %621 = arith.addf %605, %620 : vector<16x128xf32>
    %c69_167 = arith.constant 69 : index
    %622 = memref.load %arg5[%c69_167] : memref<81xf32, #tpu.memory_space<smem>>
    %623 = vector.broadcast %622 : f32 to vector<16x128xf32>
    %624 = arith.mulf %623, %612 : vector<16x128xf32>
    %625 = arith.addf %609, %624 : vector<16x128xf32>
    %c16_168 = arith.constant 16 : index
    %626 = memref.load %arg5[%c16_168] : memref<81xf32, #tpu.memory_space<smem>>
    %627 = vector.broadcast %626 : f32 to vector<16x128xf32>
    %628 = arith.mulf %627, %611 : vector<16x128xf32>
    %629 = arith.addf %617, %628 : vector<16x128xf32>
    %c43_169 = arith.constant 43 : index
    %630 = memref.load %arg5[%c43_169] : memref<81xf32, #tpu.memory_space<smem>>
    %631 = vector.broadcast %630 : f32 to vector<16x128xf32>
    %632 = arith.mulf %631, %611 : vector<16x128xf32>
    %633 = arith.addf %621, %632 : vector<16x128xf32>
    %c70_170 = arith.constant 70 : index
    %634 = memref.load %arg5[%c70_170] : memref<81xf32, #tpu.memory_space<smem>>
    %635 = vector.broadcast %634 : f32 to vector<16x128xf32>
    %636 = arith.mulf %635, %611 : vector<16x128xf32>
    %637 = arith.addf %625, %636 : vector<16x128xf32>
    %c17_171 = arith.constant 17 : index
    %638 = memref.load %arg5[%c17_171] : memref<81xf32, #tpu.memory_space<smem>>
    %639 = vector.broadcast %638 : f32 to vector<16x128xf32>
    %640 = arith.mulf %639, %613 : vector<16x128xf32>
    %641 = arith.addf %629, %640 : vector<16x128xf32>
    %c44_172 = arith.constant 44 : index
    %642 = memref.load %arg5[%c44_172] : memref<81xf32, #tpu.memory_space<smem>>
    %643 = vector.broadcast %642 : f32 to vector<16x128xf32>
    %644 = arith.mulf %643, %613 : vector<16x128xf32>
    %645 = arith.addf %633, %644 : vector<16x128xf32>
    %c71_173 = arith.constant 71 : index
    %646 = memref.load %arg5[%c71_173] : memref<81xf32, #tpu.memory_space<smem>>
    %647 = vector.broadcast %646 : f32 to vector<16x128xf32>
    %648 = arith.mulf %647, %613 : vector<16x128xf32>
    %649 = arith.addf %637, %648 : vector<16x128xf32>
    %c2_174 = arith.constant 2 : index
    %c0_175 = arith.constant 0 : index
    %c0_176 = arith.constant 0 : index
    %650 = vector.load %arg8[%c2_174, %c0_175, %c0_176] : memref<3x18x128xf32, #tpu.memory_space<vmem>>, vector<1x16x128xf32>
    %651 = vector.shape_cast %650 : vector<1x16x128xf32> to vector<16x128xf32>
    %c1_i32_177 = arith.constant 1 : i32
    %652 = tpu.dynamic_rotate %651 by %c1_i32_177 dim 1 : vector<16x128xf32>, i32 -> vector<16x128xf32>
    %c127_i32_178 = arith.constant 127 : i32
    %653 = tpu.dynamic_rotate %651 by %c127_i32_178 dim 1 : vector<16x128xf32>, i32 -> vector<16x128xf32>
    %c18_179 = arith.constant 18 : index
    %654 = memref.load %arg5[%c18_179] : memref<81xf32, #tpu.memory_space<smem>>
    %655 = vector.broadcast %654 : f32 to vector<16x128xf32>
    %656 = arith.mulf %655, %652 : vector<16x128xf32>
    %657 = arith.addf %641, %656 : vector<16x128xf32>
    %c45_180 = arith.constant 45 : index
    %658 = memref.load %arg5[%c45_180] : memref<81xf32, #tpu.memory_space<smem>>
    %659 = vector.broadcast %658 : f32 to vector<16x128xf32>
    %660 = arith.mulf %659, %652 : vector<16x128xf32>
    %661 = arith.addf %645, %660 : vector<16x128xf32>
    %c72_181 = arith.constant 72 : index
    %662 = memref.load %arg5[%c72_181] : memref<81xf32, #tpu.memory_space<smem>>
    %663 = vector.broadcast %662 : f32 to vector<16x128xf32>
    %664 = arith.mulf %663, %652 : vector<16x128xf32>
    %665 = arith.addf %649, %664 : vector<16x128xf32>
    %c19_182 = arith.constant 19 : index
    %666 = memref.load %arg5[%c19_182] : memref<81xf32, #tpu.memory_space<smem>>
    %667 = vector.broadcast %666 : f32 to vector<16x128xf32>
    %668 = arith.mulf %667, %651 : vector<16x128xf32>
    %669 = arith.addf %657, %668 : vector<16x128xf32>
    %c46_183 = arith.constant 46 : index
    %670 = memref.load %arg5[%c46_183] : memref<81xf32, #tpu.memory_space<smem>>
    %671 = vector.broadcast %670 : f32 to vector<16x128xf32>
    %672 = arith.mulf %671, %651 : vector<16x128xf32>
    %673 = arith.addf %661, %672 : vector<16x128xf32>
    %c73_184 = arith.constant 73 : index
    %674 = memref.load %arg5[%c73_184] : memref<81xf32, #tpu.memory_space<smem>>
    %675 = vector.broadcast %674 : f32 to vector<16x128xf32>
    %676 = arith.mulf %675, %651 : vector<16x128xf32>
    %677 = arith.addf %665, %676 : vector<16x128xf32>
    %c20_185 = arith.constant 20 : index
    %678 = memref.load %arg5[%c20_185] : memref<81xf32, #tpu.memory_space<smem>>
    %679 = vector.broadcast %678 : f32 to vector<16x128xf32>
    %680 = arith.mulf %679, %653 : vector<16x128xf32>
    %681 = arith.addf %669, %680 : vector<16x128xf32>
    %c47_186 = arith.constant 47 : index
    %682 = memref.load %arg5[%c47_186] : memref<81xf32, #tpu.memory_space<smem>>
    %683 = vector.broadcast %682 : f32 to vector<16x128xf32>
    %684 = arith.mulf %683, %653 : vector<16x128xf32>
    %685 = arith.addf %673, %684 : vector<16x128xf32>
    %c74_187 = arith.constant 74 : index
    %686 = memref.load %arg5[%c74_187] : memref<81xf32, #tpu.memory_space<smem>>
    %687 = vector.broadcast %686 : f32 to vector<16x128xf32>
    %688 = arith.mulf %687, %653 : vector<16x128xf32>
    %689 = arith.addf %677, %688 : vector<16x128xf32>
    %c2_188 = arith.constant 2 : index
    %c1_189 = arith.constant 1 : index
    %c0_190 = arith.constant 0 : index
    %690 = vector.load %arg8[%c2_188, %c1_189, %c0_190] : memref<3x18x128xf32, #tpu.memory_space<vmem>>, vector<1x16x128xf32>
    %691 = vector.shape_cast %690 : vector<1x16x128xf32> to vector<16x128xf32>
    %c1_i32_191 = arith.constant 1 : i32
    %692 = tpu.dynamic_rotate %691 by %c1_i32_191 dim 1 : vector<16x128xf32>, i32 -> vector<16x128xf32>
    %c127_i32_192 = arith.constant 127 : i32
    %693 = tpu.dynamic_rotate %691 by %c127_i32_192 dim 1 : vector<16x128xf32>, i32 -> vector<16x128xf32>
    %c21_193 = arith.constant 21 : index
    %694 = memref.load %arg5[%c21_193] : memref<81xf32, #tpu.memory_space<smem>>
    %695 = vector.broadcast %694 : f32 to vector<16x128xf32>
    %696 = arith.mulf %695, %692 : vector<16x128xf32>
    %697 = arith.addf %681, %696 : vector<16x128xf32>
    %c48_194 = arith.constant 48 : index
    %698 = memref.load %arg5[%c48_194] : memref<81xf32, #tpu.memory_space<smem>>
    %699 = vector.broadcast %698 : f32 to vector<16x128xf32>
    %700 = arith.mulf %699, %692 : vector<16x128xf32>
    %701 = arith.addf %685, %700 : vector<16x128xf32>
    %c75_195 = arith.constant 75 : index
    %702 = memref.load %arg5[%c75_195] : memref<81xf32, #tpu.memory_space<smem>>
    %703 = vector.broadcast %702 : f32 to vector<16x128xf32>
    %704 = arith.mulf %703, %692 : vector<16x128xf32>
    %705 = arith.addf %689, %704 : vector<16x128xf32>
    %c22_196 = arith.constant 22 : index
    %706 = memref.load %arg5[%c22_196] : memref<81xf32, #tpu.memory_space<smem>>
    %707 = vector.broadcast %706 : f32 to vector<16x128xf32>
    %708 = arith.mulf %707, %691 : vector<16x128xf32>
    %709 = arith.addf %697, %708 : vector<16x128xf32>
    %c49_197 = arith.constant 49 : index
    %710 = memref.load %arg5[%c49_197] : memref<81xf32, #tpu.memory_space<smem>>
    %711 = vector.broadcast %710 : f32 to vector<16x128xf32>
    %712 = arith.mulf %711, %691 : vector<16x128xf32>
    %713 = arith.addf %701, %712 : vector<16x128xf32>
    %c76_198 = arith.constant 76 : index
    %714 = memref.load %arg5[%c76_198] : memref<81xf32, #tpu.memory_space<smem>>
    %715 = vector.broadcast %714 : f32 to vector<16x128xf32>
    %716 = arith.mulf %715, %691 : vector<16x128xf32>
    %717 = arith.addf %705, %716 : vector<16x128xf32>
    %c23_199 = arith.constant 23 : index
    %718 = memref.load %arg5[%c23_199] : memref<81xf32, #tpu.memory_space<smem>>
    %719 = vector.broadcast %718 : f32 to vector<16x128xf32>
    %720 = arith.mulf %719, %693 : vector<16x128xf32>
    %721 = arith.addf %709, %720 : vector<16x128xf32>
    %c50_200 = arith.constant 50 : index
    %722 = memref.load %arg5[%c50_200] : memref<81xf32, #tpu.memory_space<smem>>
    %723 = vector.broadcast %722 : f32 to vector<16x128xf32>
    %724 = arith.mulf %723, %693 : vector<16x128xf32>
    %725 = arith.addf %713, %724 : vector<16x128xf32>
    %c77_201 = arith.constant 77 : index
    %726 = memref.load %arg5[%c77_201] : memref<81xf32, #tpu.memory_space<smem>>
    %727 = vector.broadcast %726 : f32 to vector<16x128xf32>
    %728 = arith.mulf %727, %693 : vector<16x128xf32>
    %729 = arith.addf %717, %728 : vector<16x128xf32>
    %c2_202 = arith.constant 2 : index
    %c2_203 = arith.constant 2 : index
    %c0_204 = arith.constant 0 : index
    %730 = vector.load %arg8[%c2_202, %c2_203, %c0_204] : memref<3x18x128xf32, #tpu.memory_space<vmem>>, vector<1x16x128xf32>
    %731 = vector.shape_cast %730 : vector<1x16x128xf32> to vector<16x128xf32>
    %c1_i32_205 = arith.constant 1 : i32
    %732 = tpu.dynamic_rotate %731 by %c1_i32_205 dim 1 : vector<16x128xf32>, i32 -> vector<16x128xf32>
    %c127_i32_206 = arith.constant 127 : i32
    %733 = tpu.dynamic_rotate %731 by %c127_i32_206 dim 1 : vector<16x128xf32>, i32 -> vector<16x128xf32>
    %c24_207 = arith.constant 24 : index
    %734 = memref.load %arg5[%c24_207] : memref<81xf32, #tpu.memory_space<smem>>
    %735 = vector.broadcast %734 : f32 to vector<16x128xf32>
    %736 = arith.mulf %735, %732 : vector<16x128xf32>
    %737 = arith.addf %721, %736 : vector<16x128xf32>
    %c51_208 = arith.constant 51 : index
    %738 = memref.load %arg5[%c51_208] : memref<81xf32, #tpu.memory_space<smem>>
    %739 = vector.broadcast %738 : f32 to vector<16x128xf32>
    %740 = arith.mulf %739, %732 : vector<16x128xf32>
    %741 = arith.addf %725, %740 : vector<16x128xf32>
    %c78_209 = arith.constant 78 : index
    %742 = memref.load %arg5[%c78_209] : memref<81xf32, #tpu.memory_space<smem>>
    %743 = vector.broadcast %742 : f32 to vector<16x128xf32>
    %744 = arith.mulf %743, %732 : vector<16x128xf32>
    %745 = arith.addf %729, %744 : vector<16x128xf32>
    %c25_210 = arith.constant 25 : index
    %746 = memref.load %arg5[%c25_210] : memref<81xf32, #tpu.memory_space<smem>>
    %747 = vector.broadcast %746 : f32 to vector<16x128xf32>
    %748 = arith.mulf %747, %731 : vector<16x128xf32>
    %749 = arith.addf %737, %748 : vector<16x128xf32>
    %c52_211 = arith.constant 52 : index
    %750 = memref.load %arg5[%c52_211] : memref<81xf32, #tpu.memory_space<smem>>
    %751 = vector.broadcast %750 : f32 to vector<16x128xf32>
    %752 = arith.mulf %751, %731 : vector<16x128xf32>
    %753 = arith.addf %741, %752 : vector<16x128xf32>
    %c79_212 = arith.constant 79 : index
    %754 = memref.load %arg5[%c79_212] : memref<81xf32, #tpu.memory_space<smem>>
    %755 = vector.broadcast %754 : f32 to vector<16x128xf32>
    %756 = arith.mulf %755, %731 : vector<16x128xf32>
    %757 = arith.addf %745, %756 : vector<16x128xf32>
    %c26_213 = arith.constant 26 : index
    %758 = memref.load %arg5[%c26_213] : memref<81xf32, #tpu.memory_space<smem>>
    %759 = vector.broadcast %758 : f32 to vector<16x128xf32>
    %760 = arith.mulf %759, %733 : vector<16x128xf32>
    %761 = arith.addf %749, %760 : vector<16x128xf32>
    %c53_214 = arith.constant 53 : index
    %762 = memref.load %arg5[%c53_214] : memref<81xf32, #tpu.memory_space<smem>>
    %763 = vector.broadcast %762 : f32 to vector<16x128xf32>
    %764 = arith.mulf %763, %733 : vector<16x128xf32>
    %765 = arith.addf %753, %764 : vector<16x128xf32>
    %c80_215 = arith.constant 80 : index
    %766 = memref.load %arg5[%c80_215] : memref<81xf32, #tpu.memory_space<smem>>
    %767 = vector.broadcast %766 : f32 to vector<16x128xf32>
    %768 = arith.mulf %767, %733 : vector<16x128xf32>
    %769 = arith.addf %757, %768 : vector<16x128xf32>
    %c0_216 = arith.constant 0 : index
    %c0_217 = arith.constant 0 : index
    %c1_218 = arith.constant 1 : index
    %c0_219 = arith.constant 0 : index
    %770 = vector.load %arg1[%c0_216, %c0_217, %c1_218, %c0_219] : memref<1x3x18x128xf32, #tpu.memory_space<vmem>>, vector<1x1x16x128xf32>
    %771 = vector.shape_cast %770 : vector<1x1x16x128xf32> to vector<16x128xf32>
    %cst_220 = arith.constant 0.000000e+00 : f32
    %772 = vector.broadcast %cst_220 : f32 to vector<16x128xf32>
    %773 = arith.maximumf %761, %772 : vector<16x128xf32>
    %774 = arith.addf %773, %771 : vector<16x128xf32>
    %c0_221 = arith.constant 0 : index
    %c0_222 = arith.constant 0 : index
    %c0_223 = arith.constant 0 : index
    %c0_224 = arith.constant 0 : index
    %775 = vector.load %arg7[%c0_221, %c0_222, %c0_223, %c0_224] : memref<1x3x16x128xf32, #tpu.memory_space<vmem>>, vector<1x1x16x128xf32>
    %776 = vector.shape_cast %775 : vector<1x1x16x128xf32> to vector<16x128xf32>
    %777 = vector.shape_cast %774 : vector<16x128xf32> to vector<1x1x16x128xf32>
    tpu.vector_store %arg7[%c0_221, %c0_222, %c0_223, %c0_224], %777 {strides = array<i32>} : memref<1x3x16x128xf32, #tpu.memory_space<vmem>>, vector<1x1x16x128xf32>,
    %c0_225 = arith.constant 0 : index
    %c1_226 = arith.constant 1 : index
    %c1_227 = arith.constant 1 : index
    %c0_228 = arith.constant 0 : index
    %778 = vector.load %arg1[%c0_225, %c1_226, %c1_227, %c0_228] : memref<1x3x18x128xf32, #tpu.memory_space<vmem>>, vector<1x1x16x128xf32>
    %779 = vector.shape_cast %778 : vector<1x1x16x128xf32> to vector<16x128xf32>
    %cst_229 = arith.constant 0.000000e+00 : f32
    %780 = vector.broadcast %cst_229 : f32 to vector<16x128xf32>
    %781 = arith.maximumf %765, %780 : vector<16x128xf32>
    %782 = arith.addf %781, %779 : vector<16x128xf32>
    %c0_230 = arith.constant 0 : index
    %c1_231 = arith.constant 1 : index
    %c0_232 = arith.constant 0 : index
    %c0_233 = arith.constant 0 : index
    %783 = vector.load %arg7[%c0_230, %c1_231, %c0_232, %c0_233] : memref<1x3x16x128xf32, #tpu.memory_space<vmem>>, vector<1x1x16x128xf32>
    %784 = vector.shape_cast %783 : vector<1x1x16x128xf32> to vector<16x128xf32>
    %785 = vector.shape_cast %782 : vector<16x128xf32> to vector<1x1x16x128xf32>
    tpu.vector_store %arg7[%c0_230, %c1_231, %c0_232, %c0_233], %785 {strides = array<i32>} : memref<1x3x16x128xf32, #tpu.memory_space<vmem>>, vector<1x1x16x128xf32>,
    %c0_234 = arith.constant 0 : index
    %c2_235 = arith.constant 2 : index
    %c1_236 = arith.constant 1 : index
    %c0_237 = arith.constant 0 : index
    %786 = vector.load %arg1[%c0_234, %c2_235, %c1_236, %c0_237] : memref<1x3x18x128xf32, #tpu.memory_space<vmem>>, vector<1x1x16x128xf32>
    %787 = vector.shape_cast %786 : vector<1x1x16x128xf32> to vector<16x128xf32>
    %cst_238 = arith.constant 0.000000e+00 : f32
    %788 = vector.broadcast %cst_238 : f32 to vector<16x128xf32>
    %789 = arith.maximumf %769, %788 : vector<16x128xf32>
    %790 = arith.addf %789, %787 : vector<16x128xf32>
    %c0_239 = arith.constant 0 : index
    %c2_240 = arith.constant 2 : index
    %c0_241 = arith.constant 0 : index
    %c0_242 = arith.constant 0 : index
    %791 = vector.load %arg7[%c0_239, %c2_240, %c0_241, %c0_242] : memref<1x3x16x128xf32, #tpu.memory_space<vmem>>, vector<1x1x16x128xf32>
    %792 = vector.shape_cast %791 : vector<1x1x16x128xf32> to vector<16x128xf32>
    %793 = vector.shape_cast %790 : vector<16x128xf32> to vector<1x1x16x128xf32>
    tpu.vector_store %arg7[%c0_239, %c2_240, %c0_241, %c0_242], %793 {strides = array<i32>} : memref<1x3x16x128xf32, #tpu.memory_space<vmem>>, vector<1x1x16x128xf32>,
    return
  }
  func.func @transform_0(%arg0: i32) -> (i32, i32, i32, i32) {
    %c0_i32 = arith.constant 0 : i32
    %c0_i32_0 = arith.constant 0 : i32
    %c0_i32_1 = arith.constant 0 : i32
    %c0_i32_2 = arith.constant 0 : i32
    return %arg0, %c0_i32, %c0_i32_0, %c0_i32_1 : i32, i32, i32, i32
  }
  func.func @transform_1(%arg0: i32) -> (i32, i32) {
    %c0_i32 = arith.constant 0 : i32
    %c0_i32_0 = arith.constant 0 : i32
    %c0_i32_1 = arith.constant 0 : i32
    return %c0_i32, %c0_i32_0 : i32, i32
  }
  func.func @transform_2(%arg0: i32) -> i32 {
    %c0_i32 = arith.constant 0 : i32
    %c0_i32_0 = arith.constant 0 : i32
    return %c0_i32 : i32
  }
  func.func @transform_3(%arg0: i32) -> i32 {
    %c0_i32 = arith.constant 0 : i32
    %c0_i32_0 = arith.constant 0 : i32
    return %c0_i32 : i32
  }
  func.func @transform_4(%arg0: i32) -> i32 {
    %c0_i32 = arith.constant 0 : i32
    %c0_i32_0 = arith.constant 0 : i32
    return %c0_i32 : i32
  }
  func.func @transform_5(%arg0: i32) -> i32 {
    %c0_i32 = arith.constant 0 : i32
    %c0_i32_0 = arith.constant 0 : i32
    return %c0_i32 : i32
  }
  func.func @transform_6(%arg0: i32) -> (i32, i32, i32, i32) {
    %c0_i32 = arith.constant 0 : i32
    %c0_i32_0 = arith.constant 0 : i32
    %c0_i32_1 = arith.constant 0 : i32
    %c0_i32_2 = arith.constant 0 : i32
    return %arg0, %c0_i32, %c0_i32_0, %c0_i32_1 : i32, i32, i32, i32
  }
}

</mosaic_0001>

<llo_original>
// kernel: tpu_custom_call.1
$region0: #{tpu_custom_call.1}
  #allocation0 [shape = 'u32[]', space=smem, size = 0x4, offset = 0x4, fixed_abs, tag = 'smem constant byte address 0x4 - core index']
  #allocation1 [shape = 'u32[72,128]{1,0:T(1,128)}', space=vmem, size = 0x9000, scoped, tag = 'internal scratch']
  #allocation2 [shape = 'f32[3,18,128]{2,1,0:T(8,128)}', space=vmem, size = 0x9000, scoped, tag = 'scratch operand']
  %s0 = inlined_call_operand.vmem [shape: f32[2,3,18,128], index: 0, kind: input, shape index: {}]
  %s1 = inlined_call_operand.vmem [shape: f32[16,128], index: 1, kind: input, shape index: {}]
  %s2 = inlined_call_operand.vmem [shape: f32[81], index: 2, kind: input, shape index: {}]
  %s3 = inlined_call_operand.vmem [shape: f32[3], index: 3, kind: input, shape index: {}]
  %s4 = inlined_call_operand.vmem [shape: f32[81], index: 4, kind: input, shape index: {}]
  %s5 = inlined_call_operand.vmem [shape: f32[3], index: 5, kind: input, shape index: {}]
  %s6 = inlined_call_operand.hbm [shape: f32[2,3,16,128], index: 6, kind: output, shape index: {}]
  %s7 = sld [smem:[#allocation0]]
  $region73: #{tpu_custom_call.1} parent=0
    _
  %s9 = ssub.s32 1, %s7
  %s10 = scalar_select 0, %s9, %s7
  $region1: #{tpu_custom_call.1} parent=0
    #allocation3 [shape = 'u8[512]{0}', space=smem, size = 0x200, scoped, tag = 'input window, operand 2, single buffered']
    #allocation4 [shape = 's32[2]{0}', space=sflag, size = 0x8, scoped, tag = 'scoped memory for tpu_custom_call.1']
    #allocation5 [shape = 's32[2]{0}', space=sflag, size = 0x8, scoped, tag = 'scoped memory for tpu_custom_call.1']
    #allocation6 [shape = 'u8[512]{0}', space=smem, size = 0x200, scoped, tag = 'input window, operand 3, single buffered']
    #allocation7 [shape = 's32[1]{0}', space=sflag, size = 0x4, scoped, tag = 'scoped memory for tpu_custom_call.1']
    #allocation8 [shape = 'u8[512]{0}', space=smem, size = 0x200, scoped, tag = 'input window, operand 4, single buffered']
    #allocation9 [shape = 'u8[512]{0}', space=smem, size = 0x200, scoped, tag = 'input window, operand 5, single buffered']
    #allocation10 [shape = 's32[1]{0}', space=sflag, size = 0x4, scoped, tag = 'scoped memory for tpu_custom_call.1']
    #allocation11 [shape = 'u8[49152]{0}', space=vmem, size = 0xc000, scoped, tag = 'output window, operand 0']
    %11 = vsyncpa [#allocation5], 0
    %12 = vsyncpa [#allocation7], 0
    %13 = vsyncpa [#allocation10], 0
    %14 = vsyncpa [#allocation4], 0
    %s15 = scalar_lea.sflag [#allocation4], 1
    %16 = vsyncpa %s15, 0
    loop: start=0, step=1, limit=4
    $region2: #{tpu_custom_call.1} parent=1 // loop_pre_header
      _
    $region3: #{tpu_custom_call.1} parent=1 // loop_header
      %s18 = sphi 0, %s22
      %p19 = scmp.ge.s32.totalorder %s18, 4
      %s28 = sphi 0, %s30
      %s31 = sphi 0, %s28
      %s32 = sphi 0, %s31
      %s48 = sphi 0, %s32
      %s52 = sphi 0, %s52
      %s54 = sphi 0, %s52
      %s55 = sphi 0, %s54
      %s69 = sphi 0, %s55
      %s73 = sphi 0, %s73
      %s75 = sphi 0, %s73
      %s76 = sphi 0, %s75
      %s90 = sphi 0, %s76
      %s94 = sphi 0, %s94
      %s96 = sphi 0, %s94
      %s97 = sphi 0, %s96
      %s111 = sphi 0, %s97
      %s115 = sphi 0, %s115
      %s117 = sphi 0, %s115
      %s118 = sphi 0, %s117
      %s132 = sphi 0, %s118
      %s136 = sphi 0, %s136
      %s138 = sphi 0, %s136
      %s139 = sphi 0, %s138
      %s153 = sphi 0, %s139
      %s159 = sphi 0, %s161
      %s162 = sphi 0, %s159
      %s163 = sphi 0, %s162
      %s179 = sphi 0, %s163
    $region4: #{tpu_custom_call.1} parent=1 // loop_header_branch
      %21 = sbr.rel (%p19) target = $region8
    $region5: #{tpu_custom_call.1} parent=1 // loop_body
      %s23 = ssub.s32 %s18, 1
      %s24 = ssub.s32 %s18, 2
      %s25 = sadd.s32 %s18, 1
      %s26 = ssub.s32 %s18, %s25
      %p27 = scmp.eq.s32.totalorder %s26, 0
      %s29 = sadd.s32 %s28, 1
      %s30 = scalar_select %p27, %s28, %s29
      %p33 = pneg %p27
      %p34 = scmp.eq.s32.totalorder %s18, 1
      %p35 = por %p33, %p34
      %p36 = scmp.ne.s32.totalorder %s28, %s31
      %p37 = scmp.eq.s32.totalorder %s18, 0
      %p38 = por %p36, %p37
      %p39 = scmp.ne.s32.totalorder %s28, %s31
      %p40 = scmp.eq.s32.totalorder %s23, 1
      %p41 = por %p39, %p40
      %p42 = scmp.ne.s32.totalorder %s31, %s32
      %p43 = scmp.eq.s32.totalorder %s23, 0
      %p44 = por %p42, %p43
      %p45 = scmp.ne.s32.totalorder %s31, %s32
      %p46 = scmp.eq.s32.totalorder %s24, 1
      %p47 = por %p45, %p46
      %p49 = scmp.ne.s32.totalorder %s32, %s48
      %p50 = scmp.eq.s32.totalorder %s24, 0
      %p51 = por %p49, %p50
      %s53 = sadd.s32 %s52, 1
      %p56 = scmp.eq.s32.totalorder %s18, 1
      %p57 = scmp.ne.s32.totalorder %s52, %s54
      %p58 = scmp.eq.s32.totalorder %s18, 0
      %p59 = por %p57, %p58
      %p60 = scmp.ne.s32.totalorder %s52, %s54
      %p61 = scmp.eq.s32.totalorder %s23, 1
      %p62 = por %p60, %p61
      %p63 = scmp.ne.s32.totalorder %s54, %s55
      %p64 = scmp.eq.s32.totalorder %s23, 0
      %p65 = por %p63, %p64
      %p66 = scmp.ne.s32.totalorder %s54, %s55
      %p67 = scmp.eq.s32.totalorder %s24, 1
      %p68 = por %p66, %p67
      %p70 = scmp.ne.s32.totalorder %s55, %s69
      %p71 = scmp.eq.s32.totalorder %s24, 0
      %p72 = por %p70, %p71
      %s74 = sadd.s32 %s73, 1
      %p77 = scmp.eq.s32.totalorder %s18, 1
      %p78 = scmp.ne.s32.totalorder %s73, %s75
      %p79 = scmp.eq.s32.totalorder %s18, 0
      %p80 = por %p78, %p79
      %p81 = scmp.ne.s32.totalorder %s73, %s75
      %p82 = scmp.eq.s32.totalorder %s23, 1
      %p83 = por %p81, %p82
      %p84 = scmp.ne.s32.totalorder %s75, %s76
      %p85 = scmp.eq.s32.totalorder %s23, 0
      %p86 = por %p84, %p85
      %p87 = scmp.ne.s32.totalorder %s75, %s76
      %p88 = scmp.eq.s32.totalorder %s24, 1
      %p89 = por %p87, %p88
      %p91 = scmp.ne.s32.totalorder %s76, %s90
      %p92 = scmp.eq.s32.totalorder %s24, 0
      %p93 = por %p91, %p92
      %s95 = sadd.s32 %s94, 1
      %p98 = scmp.eq.s32.totalorder %s18, 1
      %p99 = scmp.ne.s32.totalorder %s94, %s96
      %p100 = scmp.eq.s32.totalorder %s18, 0
      %p101 = por %p99, %p100
      %p102 = scmp.ne.s32.totalorder %s94, %s96
      %p103 = scmp.eq.s32.totalorder %s23, 1
      %p104 = por %p102, %p103
      %p105 = scmp.ne.s32.totalorder %s96, %s97
      %p106 = scmp.eq.s32.totalorder %s23, 0
      %p107 = por %p105, %p106
      %p108 = scmp.ne.s32.totalorder %s96, %s97
      %p109 = scmp.eq.s32.totalorder %s24, 1
      %p110 = por %p108, %p109
      %p112 = scmp.ne.s32.totalorder %s97, %s111
      %p113 = scmp.eq.s32.totalorder %s24, 0
      %p114 = por %p112, %p113
      %s116 = sadd.s32 %s115, 1
      %p119 = scmp.eq.s32.totalorder %s18, 1
      %p120 = scmp.ne.s32.totalorder %s115, %s117
      %p121 = scmp.eq.s32.totalorder %s18, 0
      %p122 = por %p120, %p121
      %p123 = scmp.ne.s32.totalorder %s115, %s117
      %p124 = scmp.eq.s32.totalorder %s23, 1
      %p125 = por %p123, %p124
      %p126 = scmp.ne.s32.totalorder %s117, %s118
      %p127 = scmp.eq.s32.totalorder %s23, 0
      %p128 = por %p126, %p127
      %p129 = scmp.ne.s32.totalorder %s117, %s118
      %p130 = scmp.eq.s32.totalorder %s24, 1
      %p131 = por %p129, %p130
      %p133 = scmp.ne.s32.totalorder %s118, %s132
      %p134 = scmp.eq.s32.totalorder %s24, 0
      %p135 = por %p133, %p134
      %s137 = sadd.s32 %s136, 1
      %p140 = scmp.eq.s32.totalorder %s18, 1
      %p141 = scmp.ne.s32.totalorder %s136, %s138
      %p142 = scmp.eq.s32.totalorder %s18, 0
      %p143 = por %p141, %p142
      %p144 = scmp.ne.s32.totalorder %s136, %s138
      %p145 = scmp.eq.s32.totalorder %s23, 1
      %p146 = por %p144, %p145
      %p147 = scmp.ne.s32.totalorder %s138, %s139
      %p148 = scmp.eq.s32.totalorder %s23, 0
      %p149 = por %p147, %p148
      %p150 = scmp.ne.s32.totalorder %s138, %s139
      %p151 = scmp.eq.s32.totalorder %s24, 1
      %p152 = por %p150, %p151
      %p154 = scmp.ne.s32.totalorder %s139, %s153
      %p155 = scmp.eq.s32.totalorder %s24, 0
      %p156 = por %p154, %p155
      %s157 = ssub.s32 %s18, %s25
      %p158 = scmp.eq.s32.totalorder %s157, 0
      %s160 = sadd.s32 %s159, 1
      %s161 = scalar_select %p158, %s159, %s160
      %p164 = pneg %p158
      %p165 = scmp.eq.s32.totalorder %s18, 1
      %p166 = por %p164, %p165
      %p167 = scmp.ne.s32.totalorder %s159, %s162
      %p168 = scmp.eq.s32.totalorder %s18, 0
      %p169 = por %p167, %p168
      %p170 = scmp.ne.s32.totalorder %s159, %s162
      %p171 = scmp.eq.s32.totalorder %s23, 1
      %p172 = por %p170, %p171
      %p173 = scmp.ne.s32.totalorder %s162, %s163
      %p174 = scmp.eq.s32.totalorder %s23, 0
      %p175 = por %p173, %p174
      %p176 = scmp.ne.s32.totalorder %s162, %s163
      %p177 = scmp.eq.s32.totalorder %s24, 1
      %p178 = por %p176, %p177
      %p180 = scmp.ne.s32.totalorder %s163, %s179
      %p181 = scmp.eq.s32.totalorder %s24, 0
      %p182 = por %p180, %p181
      %p183 = scmp.le.s32.totalorder 1, %s18
      %p184 = scmp.lt.s32.totalorder %s18, 3
      %p185 = pnand %p183, %p184
      %p186 = pneg %p185
      // Predicated region
      $region9: #{tpu_custom_call.1} parent=5 // pred_check
        _
      $region10: #{tpu_custom_call.1} parent=5 // pred_check_branch
        %188 = sbr.rel (%p185) target = $region12
      $region11: #{tpu_custom_call.1} parent=5 // pred_region
        %s189 = ssub.s32 %s18, 1
        // Predicated region
        $region13: #{tpu_custom_call.1} parent=11 // pred_check
          %p190 = pneg %p65
        $region14: #{tpu_custom_call.1} parent=11 // pred_check_branch
          %192 = sbr.rel (%p190) target = $region16
        $region15: #{tpu_custom_call.1} parent=11 // pred_region
          _
        $region16: #{tpu_custom_call.1} parent=11 // pred_fallthru
          _
        // Predicated region
        $region17: #{tpu_custom_call.1} parent=11 // pred_check
          %p193 = pneg %p86
        $region18: #{tpu_custom_call.1} parent=11 // pred_check_branch
          %195 = sbr.rel (%p193) target = $region20
        $region19: #{tpu_custom_call.1} parent=11 // pred_region
          %197 = vsyncadd [#allocation5], 0
          %s199 = sshll.u32 %s2, 4
          %s200 = int_to_ptr.vmem [resolvable:$true] %s199
          %202 = dma.vmem_to_smem %s200, 16, [#allocation3], [#allocation5]
        $region20: #{tpu_custom_call.1} parent=11 // pred_fallthru
          _
        // Predicated region
        $region21: #{tpu_custom_call.1} parent=11 // pred_check
          %p203 = pneg %p107
        $region22: #{tpu_custom_call.1} parent=11 // pred_check_branch
          %205 = sbr.rel (%p203) target = $region24
        $region23: #{tpu_custom_call.1} parent=11 // pred_region
          %207 = vsyncadd [#allocation7], 0
          %s209 = sshll.u32 %s3, 4
          %s210 = int_to_ptr.vmem [resolvable:$true] %s209
          %212 = dma.vmem_to_smem %s210, 16, [#allocation6], [#allocation7]
        $region24: #{tpu_custom_call.1} parent=11 // pred_fallthru
          _
        // Predicated region
        $region25: #{tpu_custom_call.1} parent=11 // pred_check
          %p213 = pneg %p128
        $region26: #{tpu_custom_call.1} parent=11 // pred_check_branch
          %215 = sbr.rel (%p213) target = $region28
        $region27: #{tpu_custom_call.1} parent=11 // pred_region
          %217 = vsyncadd [#allocation7], 0
          %s219 = sshll.u32 %s4, 4
          %s220 = int_to_ptr.vmem [resolvable:$true] %s219
          %222 = dma.vmem_to_smem %s220, 16, [#allocation8], [#allocation7]
        $region28: #{tpu_custom_call.1} parent=11 // pred_fallthru
          _
        // Predicated region
        $region29: #{tpu_custom_call.1} parent=11 // pred_check
          %p223 = pneg %p149
        $region30: #{tpu_custom_call.1} parent=11 // pred_check_branch
          %225 = sbr.rel (%p223) target = $region32
        $region31: #{tpu_custom_call.1} parent=11 // pred_region
          %227 = vsyncadd [#allocation10], 0
          %s229 = sshll.u32 %s5, 4
          %s230 = int_to_ptr.vmem [resolvable:$true] %s229
          %232 = dma.vmem_to_smem %s230, 16, [#allocation9], [#allocation10]
        $region32: #{tpu_custom_call.1} parent=11 // pred_fallthru
          _
      $region12: #{tpu_custom_call.1} parent=5 // pred_fallthru
        _
      %p233 = scmp.lt.s32.totalorder %s18, 2
      // Predicated region
      $region33: #{tpu_custom_call.1} parent=5 // pred_check
        %p234 = pneg %p233
      $region34: #{tpu_custom_call.1} parent=5 // pred_check_branch
        %236 = sbr.rel (%p234) target = $region36
      $region35: #{tpu_custom_call.1} parent=5 // pred_region
        // Predicated region
        $region37: #{tpu_custom_call.1} parent=35 // pred_check
          %p237 = pneg %p38
        $region38: #{tpu_custom_call.1} parent=35 // pred_check_branch
          %239 = sbr.rel (%p237) target = $region40
        $region39: #{tpu_custom_call.1} parent=35 // pred_region
          %p240 = scmp.lt.s32.totalorder %s18, 1
          %s241 = scalar_select %p240, %s18, 1
          %s242 = smul.addr %s241, 9
          %s243 = smul.addr %s242, 8
          %s244 = scalar_lea.vmem %s0, %s243
        $region40: #{tpu_custom_call.1} parent=35 // pred_fallthru
          _
      $region36: #{tpu_custom_call.1} parent=5 // pred_fallthru
        _
      %p245 = scmp.le.s32.totalorder 1, %s18
      %p246 = scmp.lt.s32.totalorder %s18, 3
      %p247 = pnand %p245, %p246
      %p248 = pneg %p247
      // Predicated region
      $region41: #{tpu_custom_call.1} parent=5 // pred_check
        _
      $region42: #{tpu_custom_call.1} parent=5 // pred_check_branch
        %250 = sbr.rel (%p247) target = $region44
      $region43: #{tpu_custom_call.1} parent=5 // pred_region
        %s251 = ssub.s32 %s18, 1
        // Predicated region
        $region45: #{tpu_custom_call.1} parent=43 // pred_check
          %p252 = pneg %p86
        $region46: #{tpu_custom_call.1} parent=43 // pred_check_branch
          %254 = sbr.rel (%p252) target = $region48
        $region47: #{tpu_custom_call.1} parent=43 // pred_region
          %256 = dma.done [#allocation5], 16
        $region48: #{tpu_custom_call.1} parent=43 // pred_fallthru
          _
        // Predicated region
        $region49: #{tpu_custom_call.1} parent=43 // pred_check
          %p257 = pneg %p107
        $region50: #{tpu_custom_call.1} parent=43 // pred_check_branch
          %259 = sbr.rel (%p257) target = $region52
        $region51: #{tpu_custom_call.1} parent=43 // pred_region
          %261 = dma.done [#allocation7], 16
        $region52: #{tpu_custom_call.1} parent=43 // pred_fallthru
          _
        // Predicated region
        $region53: #{tpu_custom_call.1} parent=43 // pred_check
          %p262 = pneg %p128
        $region54: #{tpu_custom_call.1} parent=43 // pred_check_branch
          %264 = sbr.rel (%p262) target = $region56
        $region55: #{tpu_custom_call.1} parent=43 // pred_region
          %266 = dma.done [#allocation7], 16
        $region56: #{tpu_custom_call.1} parent=43 // pred_fallthru
          _
        // Predicated region
        $region57: #{tpu_custom_call.1} parent=43 // pred_check
          %p267 = pneg %p149
        $region58: #{tpu_custom_call.1} parent=43 // pred_check_branch
          %269 = sbr.rel (%p267) target = $region60
        $region59: #{tpu_custom_call.1} parent=43 // pred_region
          %271 = dma.done [#allocation10], 16
        $region60: #{tpu_custom_call.1} parent=43 // pred_fallthru
          _
        %272 = sfence
        %p273 = scmp.lt.s32.totalorder %s23, 1
        %s274 = scalar_select %p273, %s23, 1
        %s275 = smul.addr %s274, 9
        %s276 = smul.addr %s275, 8
        %s277 = scalar_lea.vmem %s0, %s276
        %p278 = pneg %p44
        %p279 = pneg %p41
        %p280 = pneg %p65
        %p281 = pneg %p62
        %p282 = pneg %p86
        %p283 = pneg %p83
        %p284 = pneg %p107
        %p285 = pneg %p104
        %p286 = pneg %p128
        %p287 = pneg %p125
        %p288 = pneg %p149
        %p289 = pneg %p146
        %p290 = pneg %p175
        %p291 = pneg %p172
        %s292 = sand.u32 %s162, 1
        %s293 = scalar_lea.sflag [#allocation4], %s292
        %s294 = sand.u32 %s162, 1
        %s295 = smul.addr %s294, 48
        %s296 = scalar_lea.vmem [#allocation11], %s295
        %p297 = scmp.lt.s32.totalorder %s23, 1
        %s298 = scalar_select %p297, %s23, 1
        %s299 = smul.addr %s298, 9
        %s300 = smul.addr %s299, 8
        %s301 = scalar_lea.vmem %s0, %s300
        %v302 = vld [vmem:[%s1] sm:$0xff]
        %v303 = vld [vmem:[%s1 + $0x8] sm:$0xff]
        %304 = vst [vmem:[#allocation2] sm:$0x1] 0.0
        %305 = vst [vmem:[#allocation2 + $0x11] sm:$0x1] 0.0
        %s306 = scalar_lea.vmem [#allocation2], 24
        %307 = vst [vmem:[%s306] sm:$0x1] 0.0
        %308 = vst [vmem:[%s306 + $0x11] sm:$0x1] 0.0
        %s309 = scalar_lea.vmem [#allocation2], 48
        %310 = vst [vmem:[%s309] sm:$0x1] 0.0
        %311 = vst [vmem:[%s309 + $0x11] sm:$0x1] 0.0
        %s312 = sld [smem:[#allocation6]]
        %v313 = vstv %s312
        %s314 = sld [smem:[#allocation6 + $0x1]]
        %v315 = vstv %s314
        %s316 = sld [smem:[#allocation6 + $0x2]]
        %v317 = vstv %s316
        %v318 = vld [vmem:[%s301] sm:$0xff]
        %v319 = vld [vmem:[%s301 + $0x8] sm:$0xff]
        %320 = vrot.lane.b32.xlu0 %v318, 1
        %v321 = vpop.permute.xlu0 %320
        %322 = vrot.lane.b32.xlu0 %v319, 1
        %v323 = vpop.permute.xlu0 %322
        %324 = vrot.lane.b32.xlu0 %v318, 127
        %v325 = vpop.permute.xlu0 %324
        %326 = vrot.lane.b32.xlu0 %v319, 127
        %v327 = vpop.permute.xlu0 %326
        %s328 = sld [smem:[#allocation3]]
        %v329 = vstv %s328
        %v330 = vmul.f32 %v329, %v321
        %v331 = vmul.f32 %v329, %v323
        %v332 = vadd.f32 %v313, %v330
        %v333 = vadd.f32 %v313, %v331
        %s334 = sld [smem:[#allocation3 + $0x1b]]
        %v335 = vstv %s334
        %v336 = vmul.f32 %v335, %v321
        %v337 = vmul.f32 %v335, %v323
        %v338 = vadd.f32 %v315, %v336
        %v339 = vadd.f32 %v315, %v337
        %s340 = sld [smem:[#allocation3 + $0x36]]
        %v341 = vstv %s340
        %v342 = vmul.f32 %v341, %v321
        %v343 = vmul.f32 %v341, %v323
        %v344 = vadd.f32 %v317, %v342
        %v345 = vadd.f32 %v317, %v343
        %s346 = sld [smem:[#allocation3 + $0x1]]
        %v347 = vstv %s346
        %v348 = vmul.f32 %v347, %v318
        %v349 = vmul.f32 %v347, %v319
        %v350 = vadd.f32 %v332, %v348
        %v351 = vadd.f32 %v333, %v349
        %s352 = sld [smem:[#allocation3 + $0x1c]]
        %v353 = vstv %s352
        %v354 = vmul.f32 %v353, %v318
        %v355 = vmul.f32 %v353, %v319
        %v356 = vadd.f32 %v338, %v354
        %v357 = vadd.f32 %v339, %v355
        %s358 = sld [smem:[#allocation3 + $0x37]]
        %v359 = vstv %s358
        %v360 = vmul.f32 %v359, %v318
        %v361 = vmul.f32 %v359, %v319
        %v362 = vadd.f32 %v344, %v360
        %v363 = vadd.f32 %v345, %v361
        %s364 = sld [smem:[#allocation3 + $0x2]]
        %v365 = vstv %s364
        %v366 = vmul.f32 %v365, %v325
        %v367 = vmul.f32 %v365, %v327
        %v368 = vadd.f32 %v350, %v366
        %v369 = vadd.f32 %v351, %v367
        %s370 = sld [smem:[#allocation3 + $0x1d]]
        %v371 = vstv %s370
        %v372 = vmul.f32 %v371, %v325
        %v373 = vmul.f32 %v371, %v327
        %v374 = vadd.f32 %v356, %v372
        %v375 = vadd.f32 %v357, %v373
        %s376 = sld [smem:[#allocation3 + $0x38]]
        %v377 = vstv %s376
        %v378 = vmul.f32 %v377, %v325
        %v379 = vmul.f32 %v377, %v327
        %v380 = vadd.f32 %v362, %v378
        %v381 = vadd.f32 %v363, %v379
        %v382 = vld [vmem:[%s301 + $0x1] sm:$0xff]
        %v383 = vld [vmem:[%s301 + $0x9] sm:$0xff]
        %384 = vrot.lane.b32.xlu0 %v382, 1
        %v385 = vpop.permute.xlu0 %384
        %386 = vrot.lane.b32.xlu0 %v383, 1
        %v387 = vpop.permute.xlu0 %386
        %388 = vrot.lane.b32.xlu0 %v382, 127
        %v389 = vpop.permute.xlu0 %388
        %390 = vrot.lane.b32.xlu0 %v383, 127
        %v391 = vpop.permute.xlu0 %390
        %s392 = sld [smem:[#allocation3 + $0x3]]
        %v393 = vstv %s392
        %v394 = vmul.f32 %v393, %v385
        %v395 = vmul.f32 %v393, %v387
        %v396 = vadd.f32 %v368, %v394
        %v397 = vadd.f32 %v369, %v395
        %s398 = sld [smem:[#allocation3 + $0x1e]]
        %v399 = vstv %s398
        %v400 = vmul.f32 %v399, %v385
        %v401 = vmul.f32 %v399, %v387
        %v402 = vadd.f32 %v374, %v400
        %v403 = vadd.f32 %v375, %v401
        %s404 = sld [smem:[#allocation3 + $0x39]]
        %v405 = vstv %s404
        %v406 = vmul.f32 %v405, %v385
        %v407 = vmul.f32 %v405, %v387
        %v408 = vadd.f32 %v380, %v406
        %v409 = vadd.f32 %v381, %v407
        %s410 = sld [smem:[#allocation3 + $0x4]]
        %v411 = vstv %s410
        %v412 = vmul.f32 %v411, %v382
        %v413 = vmul.f32 %v411, %v383
        %v414 = vadd.f32 %v396, %v412
        %v415 = vadd.f32 %v397, %v413
        %s416 = sld [smem:[#allocation3 + $0x1f]]
        %v417 = vstv %s416
        %v418 = vmul.f32 %v417, %v382
        %v419 = vmul.f32 %v417, %v383
        %v420 = vadd.f32 %v402, %v418
        %v421 = vadd.f32 %v403, %v419
        %s422 = sld [smem:[#allocation3 + $0x3a]]
        %v423 = vstv %s422
        %v424 = vmul.f32 %v423, %v382
        %v425 = vmul.f32 %v423, %v383
        %v426 = vadd.f32 %v408, %v424
        %v427 = vadd.f32 %v409, %v425
        %s428 = sld [smem:[#allocation3 + $0x5]]
        %v429 = vstv %s428
        %v430 = vmul.f32 %v429, %v389
        %v431 = vmul.f32 %v429, %v391
        %v432 = vadd.f32 %v414, %v430
        %v433 = vadd.f32 %v415, %v431
        %s434 = sld [smem:[#allocation3 + $0x20]]
        %v435 = vstv %s434
        %v436 = vmul.f32 %v435, %v389
        %v437 = vmul.f32 %v435, %v391
        %v438 = vadd.f32 %v420, %v436
        %v439 = vadd.f32 %v421, %v437
        %s440 = sld [smem:[#allocation3 + $0x3b]]
        %v441 = vstv %s440
        %v442 = vmul.f32 %v441, %v389
        %v443 = vmul.f32 %v441, %v391
        %v444 = vadd.f32 %v426, %v442
        %v445 = vadd.f32 %v427, %v443
        %v446 = vld [vmem:[%s301 + $0x2] sm:$0xff]
        %v447 = vld [vmem:[%s301 + $0xa] sm:$0xff]
        %448 = vrot.lane.b32.xlu0 %v446, 1
        %v449 = vpop.permute.xlu0 %448
        %450 = vrot.lane.b32.xlu0 %v447, 1
        %v451 = vpop.permute.xlu0 %450
        %452 = vrot.lane.b32.xlu0 %v446, 127
        %v453 = vpop.permute.xlu0 %452
        %454 = vrot.lane.b32.xlu0 %v447, 127
        %v455 = vpop.permute.xlu0 %454
        %s456 = sld [smem:[#allocation3 + $0x6]]
        %v457 = vstv %s456
        %v458 = vmul.f32 %v457, %v449
        %v459 = vmul.f32 %v457, %v451
        %v460 = vadd.f32 %v432, %v458
        %v461 = vadd.f32 %v433, %v459
        %s462 = sld [smem:[#allocation3 + $0x21]]
        %v463 = vstv %s462
        %v464 = vmul.f32 %v463, %v449
        %v465 = vmul.f32 %v463, %v451
        %v466 = vadd.f32 %v438, %v464
        %v467 = vadd.f32 %v439, %v465
        %s468 = sld [smem:[#allocation3 + $0x3c]]
        %v469 = vstv %s468
        %v470 = vmul.f32 %v469, %v449
        %v471 = vmul.f32 %v469, %v451
        %v472 = vadd.f32 %v444, %v470
        %v473 = vadd.f32 %v445, %v471
        %s474 = sld [smem:[#allocation3 + $0x7]]
        %v475 = vstv %s474
        %v476 = vmul.f32 %v475, %v446
        %v477 = vmul.f32 %v475, %v447
        %v478 = vadd.f32 %v460, %v476
        %v479 = vadd.f32 %v461, %v477
        %s480 = sld [smem:[#allocation3 + $0x22]]
        %v481 = vstv %s480
        %v482 = vmul.f32 %v481, %v446
        %v483 = vmul.f32 %v481, %v447
        %v484 = vadd.f32 %v466, %v482
        %v485 = vadd.f32 %v467, %v483
        %s486 = sld [smem:[#allocation3 + $0x3d]]
        %v487 = vstv %s486
        %v488 = vmul.f32 %v487, %v446
        %v489 = vmul.f32 %v487, %v447
        %v490 = vadd.f32 %v472, %v488
        %v491 = vadd.f32 %v473, %v489
        %s492 = sld [smem:[#allocation3 + $0x8]]
        %v493 = vstv %s492
        %v494 = vmul.f32 %v493, %v453
        %v495 = vmul.f32 %v493, %v455
        %v496 = vadd.f32 %v478, %v494
        %v497 = vadd.f32 %v479, %v495
        %s498 = sld [smem:[#allocation3 + $0x23]]
        %v499 = vstv %s498
        %v500 = vmul.f32 %v499, %v453
        %v501 = vmul.f32 %v499, %v455
        %v502 = vadd.f32 %v484, %v500
        %v503 = vadd.f32 %v485, %v501
        %s504 = sld [smem:[#allocation3 + $0x3e]]
        %v505 = vstv %s504
        %v506 = vmul.f32 %v505, %v453
        %v507 = vmul.f32 %v505, %v455
        %v508 = vadd.f32 %v490, %v506
        %v509 = vadd.f32 %v491, %v507
        %s510 = scalar_lea.vmem %s301, 24
        %v511 = vld [vmem:[%s510] sm:$0xff]
        %v512 = vld [vmem:[%s510 + $0x8] sm:$0xff]
        %513 = vrot.lane.b32.xlu0 %v511, 1
        %v514 = vpop.permute.xlu0 %513
        %515 = vrot.lane.b32.xlu0 %v512, 1
        %v516 = vpop.permute.xlu0 %515
        %517 = vrot.lane.b32.xlu0 %v511, 127
        %v518 = vpop.permute.xlu0 %517
        %519 = vrot.lane.b32.xlu0 %v512, 127
        %v520 = vpop.permute.xlu0 %519
        %s521 = sld [smem:[#allocation3 + $0x9]]
        %v522 = vstv %s521
        %v523 = vmul.f32 %v522, %v514
        %v524 = vmul.f32 %v522, %v516
        %v525 = vadd.f32 %v496, %v523
        %v526 = vadd.f32 %v497, %v524
        %s527 = sld [smem:[#allocation3 + $0x24]]
        %v528 = vstv %s527
        %v529 = vmul.f32 %v528, %v514
        %v530 = vmul.f32 %v528, %v516
        %v531 = vadd.f32 %v502, %v529
        %v532 = vadd.f32 %v503, %v530
        %s533 = sld [smem:[#allocation3 + $0x3f]]
        %v534 = vstv %s533
        %v535 = vmul.f32 %v534, %v514
        %v536 = vmul.f32 %v534, %v516
        %v537 = vadd.f32 %v508, %v535
        %v538 = vadd.f32 %v509, %v536
        %s539 = sld [smem:[#allocation3 + $0xa]]
        %v540 = vstv %s539
        %v541 = vmul.f32 %v540, %v511
        %v542 = vmul.f32 %v540, %v512
        %v543 = vadd.f32 %v525, %v541
        %v544 = vadd.f32 %v526, %v542
        %s545 = sld [smem:[#allocation3 + $0x25]]
        %v546 = vstv %s545
        %v547 = vmul.f32 %v546, %v511
        %v548 = vmul.f32 %v546, %v512
        %v549 = vadd.f32 %v531, %v547
        %v550 = vadd.f32 %v532, %v548
        %s551 = sld [smem:[#allocation3 + $0x40]]
        %v552 = vstv %s551
        %v553 = vmul.f32 %v552, %v511
        %v554 = vmul.f32 %v552, %v512
        %v555 = vadd.f32 %v537, %v553
        %v556 = vadd.f32 %v538, %v554
        %s557 = sld [smem:[#allocation3 + $0xb]]
        %v558 = vstv %s557
        %v559 = vmul.f32 %v558, %v518
        %v560 = vmul.f32 %v558, %v520
        %v561 = vadd.f32 %v543, %v559
        %v562 = vadd.f32 %v544, %v560
        %s563 = sld [smem:[#allocation3 + $0x26]]
        %v564 = vstv %s563
        %v565 = vmul.f32 %v564, %v518
        %v566 = vmul.f32 %v564, %v520
        %v567 = vadd.f32 %v549, %v565
        %v568 = vadd.f32 %v550, %v566
        %s569 = sld [smem:[#allocation3 + $0x41]]
        %v570 = vstv %s569
        %v571 = vmul.f32 %v570, %v518
        %v572 = vmul.f32 %v570, %v520
        %v573 = vadd.f32 %v555, %v571
        %v574 = vadd.f32 %v556, %v572
        %v575 = vld [vmem:[%s510 + $0x1] sm:$0xff]
        %v576 = vld [vmem:[%s510 + $0x9] sm:$0xff]
        %577 = vrot.lane.b32.xlu0 %v575, 1
        %v578 = vpop.permute.xlu0 %577
        %579 = vrot.lane.b32.xlu0 %v576, 1
        %v580 = vpop.permute.xlu0 %579
        %581 = vrot.lane.b32.xlu0 %v575, 127
        %v582 = vpop.permute.xlu0 %581
        %583 = vrot.lane.b32.xlu0 %v576, 127
        %v584 = vpop.permute.xlu0 %583
        %s585 = sld [smem:[#allocation3 + $0xc]]
        %v586 = vstv %s585
        %v587 = vmul.f32 %v586, %v578
        %v588 = vmul.f32 %v586, %v580
        %v589 = vadd.f32 %v561, %v587
        %v590 = vadd.f32 %v562, %v588
        %s591 = sld [smem:[#allocation3 + $0x27]]
        %v592 = vstv %s591
        %v593 = vmul.f32 %v592, %v578
        %v594 = vmul.f32 %v592, %v580
        %v595 = vadd.f32 %v567, %v593
        %v596 = vadd.f32 %v568, %v594
        %s597 = sld [smem:[#allocation3 + $0x42]]
        %v598 = vstv %s597
        %v599 = vmul.f32 %v598, %v578
        %v600 = vmul.f32 %v598, %v580
        %v601 = vadd.f32 %v573, %v599
        %v602 = vadd.f32 %v574, %v600
        %s603 = sld [smem:[#allocation3 + $0xd]]
        %v604 = vstv %s603
        %v605 = vmul.f32 %v604, %v575
        %v606 = vmul.f32 %v604, %v576
        %v607 = vadd.f32 %v589, %v605
        %v608 = vadd.f32 %v590, %v606
        %s609 = sld [smem:[#allocation3 + $0x28]]
        %v610 = vstv %s609
        %v611 = vmul.f32 %v610, %v575
        %v612 = vmul.f32 %v610, %v576
        %v613 = vadd.f32 %v595, %v611
        %v614 = vadd.f32 %v596, %v612
        %s615 = sld [smem:[#allocation3 + $0x43]]
        %v616 = vstv %s615
        %v617 = vmul.f32 %v616, %v575
        %v618 = vmul.f32 %v616, %v576
        %v619 = vadd.f32 %v601, %v617
        %v620 = vadd.f32 %v602, %v618
        %s621 = sld [smem:[#allocation3 + $0xe]]
        %v622 = vstv %s621
        %v623 = vmul.f32 %v622, %v582
        %v624 = vmul.f32 %v622, %v584
        %v625 = vadd.f32 %v607, %v623
        %v626 = vadd.f32 %v608, %v624
        %s627 = sld [smem:[#allocation3 + $0x29]]
        %v628 = vstv %s627
        %v629 = vmul.f32 %v628, %v582
        %v630 = vmul.f32 %v628, %v584
        %v631 = vadd.f32 %v613, %v629
        %v632 = vadd.f32 %v614, %v630
        %s633 = sld [smem:[#allocation3 + $0x44]]
        %v634 = vstv %s633
        %v635 = vmul.f32 %v634, %v582
        %v636 = vmul.f32 %v634, %v584
        %v637 = vadd.f32 %v619, %v635
        %v638 = vadd.f32 %v620, %v636
        %v639 = vld [vmem:[%s510 + $0x2] sm:$0xff]
        %v640 = vld [vmem:[%s510 + $0xa] sm:$0xff]
        %641 = vrot.lane.b32.xlu0 %v639, 1
        %v642 = vpop.permute.xlu0 %641
        %643 = vrot.lane.b32.xlu0 %v640, 1
        %v644 = vpop.permute.xlu0 %643
        %645 = vrot.lane.b32.xlu0 %v639, 127
        %v646 = vpop.permute.xlu0 %645
        %647 = vrot.lane.b32.xlu0 %v640, 127
        %v648 = vpop.permute.xlu0 %647
        %s649 = sld [smem:[#allocation3 + $0xf]]
        %v650 = vstv %s649
        %v651 = vmul.f32 %v650, %v642
        %v652 = vmul.f32 %v650, %v644
        %v653 = vadd.f32 %v625, %v651
        %v654 = vadd.f32 %v626, %v652
        %s655 = sld [smem:[#allocation3 + $0x2a]]
        %v656 = vstv %s655
        %v657 = vmul.f32 %v656, %v642
        %v658 = vmul.f32 %v656, %v644
        %v659 = vadd.f32 %v631, %v657
        %v660 = vadd.f32 %v632, %v658
        %s661 = sld [smem:[#allocation3 + $0x45]]
        %v662 = vstv %s661
        %v663 = vmul.f32 %v662, %v642
        %v664 = vmul.f32 %v662, %v644
        %v665 = vadd.f32 %v637, %v663
        %v666 = vadd.f32 %v638, %v664
        %s667 = sld [smem:[#allocation3 + $0x10]]
        %v668 = vstv %s667
        %v669 = vmul.f32 %v668, %v639
        %v670 = vmul.f32 %v668, %v640
        %v671 = vadd.f32 %v653, %v669
        %v672 = vadd.f32 %v654, %v670
        %s673 = sld [smem:[#allocation3 + $0x2b]]
        %v674 = vstv %s673
        %v675 = vmul.f32 %v674, %v639
        %v676 = vmul.f32 %v674, %v640
        %v677 = vadd.f32 %v659, %v675
        %v678 = vadd.f32 %v660, %v676
        %s679 = sld [smem:[#allocation3 + $0x46]]
        %v680 = vstv %s679
        %v681 = vmul.f32 %v680, %v639
        %v682 = vmul.f32 %v680, %v640
        %v683 = vadd.f32 %v665, %v681
        %v684 = vadd.f32 %v666, %v682
        %s685 = sld [smem:[#allocation3 + $0x11]]
        %v686 = vstv %s685
        %v687 = vmul.f32 %v686, %v646
        %v688 = vmul.f32 %v686, %v648
        %v689 = vadd.f32 %v671, %v687
        %v690 = vadd.f32 %v672, %v688
        %s691 = sld [smem:[#allocation3 + $0x2c]]
        %v692 = vstv %s691
        %v693 = vmul.f32 %v692, %v646
        %v694 = vmul.f32 %v692, %v648
        %v695 = vadd.f32 %v677, %v693
        %v696 = vadd.f32 %v678, %v694
        %s697 = sld [smem:[#allocation3 + $0x47]]
        %v698 = vstv %s697
        %v699 = vmul.f32 %v698, %v646
        %v700 = vmul.f32 %v698, %v648
        %v701 = vadd.f32 %v683, %v699
        %v702 = vadd.f32 %v684, %v700
        %s703 = scalar_lea.vmem %s301, 48
        %v704 = vld [vmem:[%s703] sm:$0xff]
        %v705 = vld [vmem:[%s703 + $0x8] sm:$0xff]
        %706 = vrot.lane.b32.xlu0 %v704, 1
        %v707 = vpop.permute.xlu0 %706
        %708 = vrot.lane.b32.xlu0 %v705, 1
        %v709 = vpop.permute.xlu0 %708
        %710 = vrot.lane.b32.xlu0 %v704, 127
        %v711 = vpop.permute.xlu0 %710
        %712 = vrot.lane.b32.xlu0 %v705, 127
        %v713 = vpop.permute.xlu0 %712
        %s714 = sld [smem:[#allocation3 + $0x12]]
        %v715 = vstv %s714
        %v716 = vmul.f32 %v715, %v707
        %v717 = vmul.f32 %v715, %v709
        %v718 = vadd.f32 %v689, %v716
        %v719 = vadd.f32 %v690, %v717
        %s720 = sld [smem:[#allocation3 + $0x2d]]
        %v721 = vstv %s720
        %v722 = vmul.f32 %v721, %v707
        %v723 = vmul.f32 %v721, %v709
        %v724 = vadd.f32 %v695, %v722
        %v725 = vadd.f32 %v696, %v723
        %s726 = sld [smem:[#allocation3 + $0x48]]
        %v727 = vstv %s726
        %v728 = vmul.f32 %v727, %v707
        %v729 = vmul.f32 %v727, %v709
        %v730 = vadd.f32 %v701, %v728
        %v731 = vadd.f32 %v702, %v729
        %s732 = sld [smem:[#allocation3 + $0x13]]
        %v733 = vstv %s732
        %v734 = vmul.f32 %v733, %v704
        %v735 = vmul.f32 %v733, %v705
        %v736 = vadd.f32 %v718, %v734
        %v737 = vadd.f32 %v719, %v735
        %s738 = sld [smem:[#allocation3 + $0x2e]]
        %v739 = vstv %s738
        %v740 = vmul.f32 %v739, %v704
        %v741 = vmul.f32 %v739, %v705
        %v742 = vadd.f32 %v724, %v740
        %v743 = vadd.f32 %v725, %v741
        %s744 = sld [smem:[#allocation3 + $0x49]]
        %v745 = vstv %s744
        %v746 = vmul.f32 %v745, %v704
        %v747 = vmul.f32 %v745, %v705
        %v748 = vadd.f32 %v730, %v746
        %v749 = vadd.f32 %v731, %v747
        %s750 = sld [smem:[#allocation3 + $0x14]]
        %v751 = vstv %s750
        %v752 = vmul.f32 %v751, %v711
        %v753 = vmul.f32 %v751, %v713
        %v754 = vadd.f32 %v736, %v752
        %v755 = vadd.f32 %v737, %v753
        %s756 = sld [smem:[#allocation3 + $0x2f]]
        %v757 = vstv %s756
        %v758 = vmul.f32 %v757, %v711
        %v759 = vmul.f32 %v757, %v713
        %v760 = vadd.f32 %v742, %v758
        %v761 = vadd.f32 %v743, %v759
        %s762 = sld [smem:[#allocation3 + $0x4a]]
        %v763 = vstv %s762
        %v764 = vmul.f32 %v763, %v711
        %v765 = vmul.f32 %v763, %v713
        %v766 = vadd.f32 %v748, %v764
        %v767 = vadd.f32 %v749, %v765
        %v768 = vld [vmem:[%s703 + $0x1] sm:$0xff]
        %v769 = vld [vmem:[%s703 + $0x9] sm:$0xff]
        %770 = vrot.lane.b32.xlu0 %v768, 1
        %v771 = vpop.permute.xlu0 %770
        %772 = vrot.lane.b32.xlu0 %v769, 1
        %v773 = vpop.permute.xlu0 %772
        %774 = vrot.lane.b32.xlu0 %v768, 127
        %v775 = vpop.permute.xlu0 %774
        %776 = vrot.lane.b32.xlu0 %v769, 127
        %v777 = vpop.permute.xlu0 %776
        %s778 = sld [smem:[#allocation3 + $0x15]]
        %v779 = vstv %s778
        %v780 = vmul.f32 %v779, %v771
        %v781 = vmul.f32 %v779, %v773
        %v782 = vadd.f32 %v754, %v780
        %v783 = vadd.f32 %v755, %v781
        %s784 = sld [smem:[#allocation3 + $0x30]]
        %v785 = vstv %s784
        %v786 = vmul.f32 %v785, %v771
        %v787 = vmul.f32 %v785, %v773
        %v788 = vadd.f32 %v760, %v786
        %v789 = vadd.f32 %v761, %v787
        %s790 = sld [smem:[#allocation3 + $0x4b]]
        %v791 = vstv %s790
        %v792 = vmul.f32 %v791, %v771
        %v793 = vmul.f32 %v791, %v773
        %v794 = vadd.f32 %v766, %v792
        %v795 = vadd.f32 %v767, %v793
        %s796 = sld [smem:[#allocation3 + $0x16]]
        %v797 = vstv %s796
        %v798 = vmul.f32 %v797, %v768
        %v799 = vmul.f32 %v797, %v769
        %v800 = vadd.f32 %v782, %v798
        %v801 = vadd.f32 %v783, %v799
        %s802 = sld [smem:[#allocation3 + $0x31]]
        %v803 = vstv %s802
        %v804 = vmul.f32 %v803, %v768
        %v805 = vmul.f32 %v803, %v769
        %v806 = vadd.f32 %v788, %v804
        %v807 = vadd.f32 %v789, %v805
        %s808 = sld [smem:[#allocation3 + $0x4c]]
        %v809 = vstv %s808
        %v810 = vmul.f32 %v809, %v768
        %v811 = vmul.f32 %v809, %v769
        %v812 = vadd.f32 %v794, %v810
        %v813 = vadd.f32 %v795, %v811
        %s814 = sld [smem:[#allocation3 + $0x17]]
        %v815 = vstv %s814
        %v816 = vmul.f32 %v815, %v775
        %v817 = vmul.f32 %v815, %v777
        %v818 = vadd.f32 %v800, %v816
        %v819 = vadd.f32 %v801, %v817
        %s820 = sld [smem:[#allocation3 + $0x32]]
        %v821 = vstv %s820
        %v822 = vmul.f32 %v821, %v775
        %v823 = vmul.f32 %v821, %v777
        %v824 = vadd.f32 %v806, %v822
        %v825 = vadd.f32 %v807, %v823
        %s826 = sld [smem:[#allocation3 + $0x4d]]
        %v827 = vstv %s826
        %v828 = vmul.f32 %v827, %v775
        %v829 = vmul.f32 %v827, %v777
        %v830 = vadd.f32 %v812, %v828
        %v831 = vadd.f32 %v813, %v829
        %v832 = vld [vmem:[%s703 + $0x2] sm:$0xff]
        %v833 = vld [vmem:[%s703 + $0xa] sm:$0xff]
        %834 = vrot.lane.b32.xlu0 %v832, 1
        %v835 = vpop.permute.xlu0 %834
        %836 = vrot.lane.b32.xlu0 %v833, 1
        %v837 = vpop.permute.xlu0 %836
        %838 = vrot.lane.b32.xlu0 %v832, 127
        %v839 = vpop.permute.xlu0 %838
        %840 = vrot.lane.b32.xlu0 %v833, 127
        %v841 = vpop.permute.xlu0 %840
        %s842 = sld [smem:[#allocation3 + $0x18]]
        %v843 = vstv %s842
        %v844 = vmul.f32 %v843, %v835
        %v845 = vmul.f32 %v843, %v837
        %v846 = vadd.f32 %v818, %v844
        %v847 = vadd.f32 %v819, %v845
        %s848 = sld [smem:[#allocation3 + $0x33]]
        %v849 = vstv %s848
        %v850 = vmul.f32 %v849, %v835
        %v851 = vmul.f32 %v849, %v837
        %v852 = vadd.f32 %v824, %v850
        %v853 = vadd.f32 %v825, %v851
        %s854 = sld [smem:[#allocation3 + $0x4e]]
        %v855 = vstv %s854
        %v856 = vmul.f32 %v855, %v835
        %v857 = vmul.f32 %v855, %v837
        %v858 = vadd.f32 %v830, %v856
        %v859 = vadd.f32 %v831, %v857
        %s860 = sld [smem:[#allocation3 + $0x19]]
        %v861 = vstv %s860
        %v862 = vmul.f32 %v861, %v832
        %v863 = vmul.f32 %v861, %v833
        %v864 = vadd.f32 %v846, %v862
        %v865 = vadd.f32 %v847, %v863
        %s866 = sld [smem:[#allocation3 + $0x34]]
        %v867 = vstv %s866
        %v868 = vmul.f32 %v867, %v832
        %v869 = vmul.f32 %v867, %v833
        %v870 = vadd.f32 %v852, %v868
        %v871 = vadd.f32 %v853, %v869
        %s872 = sld [smem:[#allocation3 + $0x4f]]
        %v873 = vstv %s872
        %v874 = vmul.f32 %v873, %v832
        %v875 = vmul.f32 %v873, %v833
        %v876 = vadd.f32 %v858, %v874
        %v877 = vadd.f32 %v859, %v875
        %s878 = sld [smem:[#allocation3 + $0x1a]]
        %v879 = vstv %s878
        %v880 = vmul.f32 %v879, %v839
        %v881 = vmul.f32 %v879, %v841
        %v882 = vadd.f32 %v864, %v880
        %v883 = vadd.f32 %v865, %v881
        %s884 = sld [smem:[#allocation3 + $0x35]]
        %v885 = vstv %s884
        %v886 = vmul.f32 %v885, %v839
        %v887 = vmul.f32 %v885, %v841
        %v888 = vadd.f32 %v870, %v886
        %v889 = vadd.f32 %v871, %v887
        %s890 = sld [smem:[#allocation3 + $0x50]]
        %v891 = vstv %s890
        %v892 = vmul.f32 %v891, %v839
        %v893 = vmul.f32 %v891, %v841
        %v894 = vadd.f32 %v876, %v892
        %v895 = vadd.f32 %v877, %v893
        %v896 = vmax.f32 %v882, 0.0
        %v897 = vmax.f32 %v883, 0.0
        %v898 = vmul.f32 %v896, %v302
        %v899 = vmul.f32 %v897, %v303
        %900 = vst [vmem:[#allocation2 + $0x1] sm:$0xff] %v898
        %901 = vst [vmem:[#allocation2 + $0x9] sm:$0xff] %v899
        %v902 = vmax.f32 %v888, 0.0
        %v903 = vmax.f32 %v889, 0.0
        %v904 = vmul.f32 %v902, %v302
        %v905 = vmul.f32 %v903, %v303
        %906 = vst [vmem:[%s306 + $0x1] sm:$0xff] %v904
        %907 = vst [vmem:[%s306 + $0x9] sm:$0xff] %v905
        %v908 = vmax.f32 %v894, 0.0
        %v909 = vmax.f32 %v895, 0.0
        %v910 = vmul.f32 %v908, %v302
        %v911 = vmul.f32 %v909, %v303
        %912 = vst [vmem:[%s309 + $0x1] sm:$0xff] %v910
        %913 = vst [vmem:[%s309 + $0x9] sm:$0xff] %v911
        %s914 = sld [smem:[#allocation9]]
        %v915 = vstv %s914
        %s916 = sld [smem:[#allocation9 + $0x1]]
        %v917 = vstv %s916
        %s918 = sld [smem:[#allocation9 + $0x2]]
        %v919 = vstv %s918
        %v920 = vld [vmem:[#allocation2] sm:$0xff]
        %v921 = vld [vmem:[#allocation2 + $0x8] sm:$0xff]
        %922 = vrot.lane.b32.xlu0 %v920, 1
        %v923 = vpop.permute.xlu0 %922
        %924 = vrot.lane.b32.xlu0 %v921, 1
        %v925 = vpop.permute.xlu0 %924
        %926 = vrot.lane.b32.xlu0 %v920, 127
        %v927 = vpop.permute.xlu0 %926
        %928 = vrot.lane.b32.xlu0 %v921, 127
        %v929 = vpop.permute.xlu0 %928
        %s930 = sld [smem:[#allocation8]]
        %v931 = vstv %s930
        %v932 = vmul.f32 %v931, %v923
        %v933 = vmul.f32 %v931, %v925
        %v934 = vadd.f32 %v915, %v932
        %v935 = vadd.f32 %v915, %v933
        %s936 = sld [smem:[#allocation8 + $0x1b]]
        %v937 = vstv %s936
        %v938 = vmul.f32 %v937, %v923
        %v939 = vmul.f32 %v937, %v925
        %v940 = vadd.f32 %v917, %v938
        %v941 = vadd.f32 %v917, %v939
        %s942 = sld [smem:[#allocation8 + $0x36]]
        %v943 = vstv %s942
        %v944 = vmul.f32 %v943, %v923
        %v945 = vmul.f32 %v943, %v925
        %v946 = vadd.f32 %v919, %v944
        %v947 = vadd.f32 %v919, %v945
        %s948 = sld [smem:[#allocation8 + $0x1]]
        %v949 = vstv %s948
        %v950 = vmul.f32 %v949, %v920
        %v951 = vmul.f32 %v949, %v921
        %v952 = vadd.f32 %v934, %v950
        %v953 = vadd.f32 %v935, %v951
        %s954 = sld [smem:[#allocation8 + $0x1c]]
        %v955 = vstv %s954
        %v956 = vmul.f32 %v955, %v920
        %v957 = vmul.f32 %v955, %v921
        %v958 = vadd.f32 %v940, %v956
        %v959 = vadd.f32 %v941, %v957
        %s960 = sld [smem:[#allocation8 + $0x37]]
        %v961 = vstv %s960
        %v962 = vmul.f32 %v961, %v920
        %v963 = vmul.f32 %v961, %v921
        %v964 = vadd.f32 %v946, %v962
        %v965 = vadd.f32 %v947, %v963
        %s966 = sld [smem:[#allocation8 + $0x2]]
        %v967 = vstv %s966
        %v968 = vmul.f32 %v967, %v927
        %v969 = vmul.f32 %v967, %v929
        %v970 = vadd.f32 %v952, %v968
        %v971 = vadd.f32 %v953, %v969
        %s972 = sld [smem:[#allocation8 + $0x1d]]
        %v973 = vstv %s972
        %v974 = vmul.f32 %v973, %v927
        %v975 = vmul.f32 %v973, %v929
        %v976 = vadd.f32 %v958, %v974
        %v977 = vadd.f32 %v959, %v975
        %s978 = sld [smem:[#allocation8 + $0x38]]
        %v979 = vstv %s978
        %v980 = vmul.f32 %v979, %v927
        %v981 = vmul.f32 %v979, %v929
        %v982 = vadd.f32 %v964, %v980
        %v983 = vadd.f32 %v965, %v981
        %v984 = vld [vmem:[#allocation2 + $0x1] sm:$0xff]
        %v985 = vld [vmem:[#allocation2 + $0x9] sm:$0xff]
        %986 = vrot.lane.b32.xlu0 %v984, 1
        %v987 = vpop.permute.xlu0 %986
        %988 = vrot.lane.b32.xlu0 %v985, 1
        %v989 = vpop.permute.xlu0 %988
        %990 = vrot.lane.b32.xlu0 %v984, 127
        %v991 = vpop.permute.xlu0 %990
        %992 = vrot.lane.b32.xlu0 %v985, 127
        %v993 = vpop.permute.xlu0 %992
        %s994 = sld [smem:[#allocation8 + $0x3]]
        %v995 = vstv %s994
        %v996 = vmul.f32 %v995, %v987
        %v997 = vmul.f32 %v995, %v989
        %v998 = vadd.f32 %v970, %v996
        %v999 = vadd.f32 %v971, %v997
        %s1000 = sld [smem:[#allocation8 + $0x1e]]
        %v1001 = vstv %s1000
        %v1002 = vmul.f32 %v1001, %v987
        %v1003 = vmul.f32 %v1001, %v989
        %v1004 = vadd.f32 %v976, %v1002
        %v1005 = vadd.f32 %v977, %v1003
        %s1006 = sld [smem:[#allocation8 + $0x39]]
        %v1007 = vstv %s1006
        %v1008 = vmul.f32 %v1007, %v987
        %v1009 = vmul.f32 %v1007, %v989
        %v1010 = vadd.f32 %v982, %v1008
        %v1011 = vadd.f32 %v983, %v1009
        %s1012 = sld [smem:[#allocation8 + $0x4]]
        %v1013 = vstv %s1012
        %v1014 = vmul.f32 %v1013, %v984
        %v1015 = vmul.f32 %v1013, %v985
        %v1016 = vadd.f32 %v998, %v1014
        %v1017 = vadd.f32 %v999, %v1015
        %s1018 = sld [smem:[#allocation8 + $0x1f]]
        %v1019 = vstv %s1018
        %v1020 = vmul.f32 %v1019, %v984
        %v1021 = vmul.f32 %v1019, %v985
        %v1022 = vadd.f32 %v1004, %v1020
        %v1023 = vadd.f32 %v1005, %v1021
        %s1024 = sld [smem:[#allocation8 + $0x3a]]
        %v1025 = vstv %s1024
        %v1026 = vmul.f32 %v1025, %v984
        %v1027 = vmul.f32 %v1025, %v985
        %v1028 = vadd.f32 %v1010, %v1026
        %v1029 = vadd.f32 %v1011, %v1027
        %s1030 = sld [smem:[#allocation8 + $0x5]]
        %v1031 = vstv %s1030
        %v1032 = vmul.f32 %v1031, %v991
        %v1033 = vmul.f32 %v1031, %v993
        %v1034 = vadd.f32 %v1016, %v1032
        %v1035 = vadd.f32 %v1017, %v1033
        %s1036 = sld [smem:[#allocation8 + $0x20]]
        %v1037 = vstv %s1036
        %v1038 = vmul.f32 %v1037, %v991
        %v1039 = vmul.f32 %v1037, %v993
        %v1040 = vadd.f32 %v1022, %v1038
        %v1041 = vadd.f32 %v1023, %v1039
        %s1042 = sld [smem:[#allocation8 + $0x3b]]
        %v1043 = vstv %s1042
        %v1044 = vmul.f32 %v1043, %v991
        %v1045 = vmul.f32 %v1043, %v993
        %v1046 = vadd.f32 %v1028, %v1044
        %v1047 = vadd.f32 %v1029, %v1045
        %v1048 = vld [vmem:[#allocation2 + $0x2] sm:$0xff]
        %v1049 = vld [vmem:[#allocation2 + $0xa] sm:$0xff]
        %1050 = vrot.lane.b32.xlu0 %v1048, 1
        %v1051 = vpop.permute.xlu0 %1050
        %1052 = vrot.lane.b32.xlu0 %v1049, 1
        %v1053 = vpop.permute.xlu0 %1052
        %1054 = vrot.lane.b32.xlu0 %v1048, 127
        %v1055 = vpop.permute.xlu0 %1054
        %1056 = vrot.lane.b32.xlu0 %v1049, 127
        %v1057 = vpop.permute.xlu0 %1056
        %s1058 = sld [smem:[#allocation8 + $0x6]]
        %v1059 = vstv %s1058
        %v1060 = vmul.f32 %v1059, %v1051
        %v1061 = vmul.f32 %v1059, %v1053
        %v1062 = vadd.f32 %v1034, %v1060
        %v1063 = vadd.f32 %v1035, %v1061
        %s1064 = sld [smem:[#allocation8 + $0x21]]
        %v1065 = vstv %s1064
        %v1066 = vmul.f32 %v1065, %v1051
        %v1067 = vmul.f32 %v1065, %v1053
        %v1068 = vadd.f32 %v1040, %v1066
        %v1069 = vadd.f32 %v1041, %v1067
        %s1070 = sld [smem:[#allocation8 + $0x3c]]
        %v1071 = vstv %s1070
        %v1072 = vmul.f32 %v1071, %v1051
        %v1073 = vmul.f32 %v1071, %v1053
        %v1074 = vadd.f32 %v1046, %v1072
        %v1075 = vadd.f32 %v1047, %v1073
        %s1076 = sld [smem:[#allocation8 + $0x7]]
        %v1077 = vstv %s1076
        %v1078 = vmul.f32 %v1077, %v1048
        %v1079 = vmul.f32 %v1077, %v1049
        %v1080 = vadd.f32 %v1062, %v1078
        %v1081 = vadd.f32 %v1063, %v1079
        %s1082 = sld [smem:[#allocation8 + $0x22]]
        %v1083 = vstv %s1082
        %v1084 = vmul.f32 %v1083, %v1048
        %v1085 = vmul.f32 %v1083, %v1049
        %v1086 = vadd.f32 %v1068, %v1084
        %v1087 = vadd.f32 %v1069, %v1085
        %s1088 = sld [smem:[#allocation8 + $0x3d]]
        %v1089 = vstv %s1088
        %v1090 = vmul.f32 %v1089, %v1048
        %v1091 = vmul.f32 %v1089, %v1049
        %v1092 = vadd.f32 %v1074, %v1090
        %v1093 = vadd.f32 %v1075, %v1091
        %s1094 = sld [smem:[#allocation8 + $0x8]]
        %v1095 = vstv %s1094
        %v1096 = vmul.f32 %v1095, %v1055
        %v1097 = vmul.f32 %v1095, %v1057
        %v1098 = vadd.f32 %v1080, %v1096
        %v1099 = vadd.f32 %v1081, %v1097
        %s1100 = sld [smem:[#allocation8 + $0x23]]
        %v1101 = vstv %s1100
        %v1102 = vmul.f32 %v1101, %v1055
        %v1103 = vmul.f32 %v1101, %v1057
        %v1104 = vadd.f32 %v1086, %v1102
        %v1105 = vadd.f32 %v1087, %v1103
        %s1106 = sld [smem:[#allocation8 + $0x3e]]
        %v1107 = vstv %s1106
        %v1108 = vmul.f32 %v1107, %v1055
        %v1109 = vmul.f32 %v1107, %v1057
        %v1110 = vadd.f32 %v1092, %v1108
        %v1111 = vadd.f32 %v1093, %v1109
        %v1112 = vld [vmem:[%s306] sm:$0xff]
        %v1113 = vld [vmem:[%s306 + $0x8] sm:$0xff]
        %1114 = vrot.lane.b32.xlu0 %v1112, 1
        %v1115 = vpop.permute.xlu0 %1114
        %1116 = vrot.lane.b32.xlu0 %v1113, 1
        %v1117 = vpop.permute.xlu0 %1116
        %1118 = vrot.lane.b32.xlu0 %v1112, 127
        %v1119 = vpop.permute.xlu0 %1118
        %1120 = vrot.lane.b32.xlu0 %v1113, 127
        %v1121 = vpop.permute.xlu0 %1120
        %s1122 = sld [smem:[#allocation8 + $0x9]]
        %v1123 = vstv %s1122
        %v1124 = vmul.f32 %v1123, %v1115
        %v1125 = vmul.f32 %v1123, %v1117
        %v1126 = vadd.f32 %v1098, %v1124
        %v1127 = vadd.f32 %v1099, %v1125
        %s1128 = sld [smem:[#allocation8 + $0x24]]
        %v1129 = vstv %s1128
        %v1130 = vmul.f32 %v1129, %v1115
        %v1131 = vmul.f32 %v1129, %v1117
        %v1132 = vadd.f32 %v1104, %v1130
        %v1133 = vadd.f32 %v1105, %v1131
        %s1134 = sld [smem:[#allocation8 + $0x3f]]
        %v1135 = vstv %s1134
        %v1136 = vmul.f32 %v1135, %v1115
        %v1137 = vmul.f32 %v1135, %v1117
        %v1138 = vadd.f32 %v1110, %v1136
        %v1139 = vadd.f32 %v1111, %v1137
        %s1140 = sld [smem:[#allocation8 + $0xa]]
        %v1141 = vstv %s1140
        %v1142 = vmul.f32 %v1141, %v1112
        %v1143 = vmul.f32 %v1141, %v1113
        %v1144 = vadd.f32 %v1126, %v1142
        %v1145 = vadd.f32 %v1127, %v1143
        %s1146 = sld [smem:[#allocation8 + $0x25]]
        %v1147 = vstv %s1146
        %v1148 = vmul.f32 %v1147, %v1112
        %v1149 = vmul.f32 %v1147, %v1113
        %v1150 = vadd.f32 %v1132, %v1148
        %v1151 = vadd.f32 %v1133, %v1149
        %s1152 = sld [smem:[#allocation8 + $0x40]]
        %v1153 = vstv %s1152
        %v1154 = vmul.f32 %v1153, %v1112
        %v1155 = vmul.f32 %v1153, %v1113
        %v1156 = vadd.f32 %v1138, %v1154
        %v1157 = vadd.f32 %v1139, %v1155
        %s1158 = sld [smem:[#allocation8 + $0xb]]
        %v1159 = vstv %s1158
        %v1160 = vmul.f32 %v1159, %v1119
        %v1161 = vmul.f32 %v1159, %v1121
        %v1162 = vadd.f32 %v1144, %v1160
        %v1163 = vadd.f32 %v1145, %v1161
        %s1164 = sld [smem:[#allocation8 + $0x26]]
        %v1165 = vstv %s1164
        %v1166 = vmul.f32 %v1165, %v1119
        %v1167 = vmul.f32 %v1165, %v1121
        %v1168 = vadd.f32 %v1150, %v1166
        %v1169 = vadd.f32 %v1151, %v1167
        %s1170 = sld [smem:[#allocation8 + $0x41]]
        %v1171 = vstv %s1170
        %v1172 = vmul.f32 %v1171, %v1119
        %v1173 = vmul.f32 %v1171, %v1121
        %v1174 = vadd.f32 %v1156, %v1172
        %v1175 = vadd.f32 %v1157, %v1173
        %v1176 = vld [vmem:[%s306 + $0x1] sm:$0xff]
        %v1177 = vld [vmem:[%s306 + $0x9] sm:$0xff]
        %1178 = vrot.lane.b32.xlu0 %v1176, 1
        %v1179 = vpop.permute.xlu0 %1178
        %1180 = vrot.lane.b32.xlu0 %v1177, 1
        %v1181 = vpop.permute.xlu0 %1180
        %1182 = vrot.lane.b32.xlu0 %v1176, 127
        %v1183 = vpop.permute.xlu0 %1182
        %1184 = vrot.lane.b32.xlu0 %v1177, 127
        %v1185 = vpop.permute.xlu0 %1184
        %s1186 = sld [smem:[#allocation8 + $0xc]]
        %v1187 = vstv %s1186
        %v1188 = vmul.f32 %v1187, %v1179
        %v1189 = vmul.f32 %v1187, %v1181
        %v1190 = vadd.f32 %v1162, %v1188
        %v1191 = vadd.f32 %v1163, %v1189
        %s1192 = sld [smem:[#allocation8 + $0x27]]
        %v1193 = vstv %s1192
        %v1194 = vmul.f32 %v1193, %v1179
        %v1195 = vmul.f32 %v1193, %v1181
        %v1196 = vadd.f32 %v1168, %v1194
        %v1197 = vadd.f32 %v1169, %v1195
        %s1198 = sld [smem:[#allocation8 + $0x42]]
        %v1199 = vstv %s1198
        %v1200 = vmul.f32 %v1199, %v1179
        %v1201 = vmul.f32 %v1199, %v1181
        %v1202 = vadd.f32 %v1174, %v1200
        %v1203 = vadd.f32 %v1175, %v1201
        %s1204 = sld [smem:[#allocation8 + $0xd]]
        %v1205 = vstv %s1204
        %v1206 = vmul.f32 %v1205, %v1176
        %v1207 = vmul.f32 %v1205, %v1177
        %v1208 = vadd.f32 %v1190, %v1206
        %v1209 = vadd.f32 %v1191, %v1207
        %s1210 = sld [smem:[#allocation8 + $0x28]]
        %v1211 = vstv %s1210
        %v1212 = vmul.f32 %v1211, %v1176
        %v1213 = vmul.f32 %v1211, %v1177
        %v1214 = vadd.f32 %v1196, %v1212
        %v1215 = vadd.f32 %v1197, %v1213
        %s1216 = sld [smem:[#allocation8 + $0x43]]
        %v1217 = vstv %s1216
        %v1218 = vmul.f32 %v1217, %v1176
        %v1219 = vmul.f32 %v1217, %v1177
        %v1220 = vadd.f32 %v1202, %v1218
        %v1221 = vadd.f32 %v1203, %v1219
        %s1222 = sld [smem:[#allocation8 + $0xe]]
        %v1223 = vstv %s1222
        %v1224 = vmul.f32 %v1223, %v1183
        %v1225 = vmul.f32 %v1223, %v1185
        %v1226 = vadd.f32 %v1208, %v1224
        %v1227 = vadd.f32 %v1209, %v1225
        %s1228 = sld [smem:[#allocation8 + $0x29]]
        %v1229 = vstv %s1228
        %v1230 = vmul.f32 %v1229, %v1183
        %v1231 = vmul.f32 %v1229, %v1185
        %v1232 = vadd.f32 %v1214, %v1230
        %v1233 = vadd.f32 %v1215, %v1231
        %s1234 = sld [smem:[#allocation8 + $0x44]]
        %v1235 = vstv %s1234
        %v1236 = vmul.f32 %v1235, %v1183
        %v1237 = vmul.f32 %v1235, %v1185
        %v1238 = vadd.f32 %v1220, %v1236
        %v1239 = vadd.f32 %v1221, %v1237
        %v1240 = vld [vmem:[%s306 + $0x2] sm:$0xff]
        %v1241 = vld [vmem:[%s306 + $0xa] sm:$0xff]
        %1242 = vrot.lane.b32.xlu0 %v1240, 1
        %v1243 = vpop.permute.xlu0 %1242
        %1244 = vrot.lane.b32.xlu0 %v1241, 1
        %v1245 = vpop.permute.xlu0 %1244
        %1246 = vrot.lane.b32.xlu0 %v1240, 127
        %v1247 = vpop.permute.xlu0 %1246
        %1248 = vrot.lane.b32.xlu0 %v1241, 127
        %v1249 = vpop.permute.xlu0 %1248
        %s1250 = sld [smem:[#allocation8 + $0xf]]
        %v1251 = vstv %s1250
        %v1252 = vmul.f32 %v1251, %v1243
        %v1253 = vmul.f32 %v1251, %v1245
        %v1254 = vadd.f32 %v1226, %v1252
        %v1255 = vadd.f32 %v1227, %v1253
        %s1256 = sld [smem:[#allocation8 + $0x2a]]
        %v1257 = vstv %s1256
        %v1258 = vmul.f32 %v1257, %v1243
        %v1259 = vmul.f32 %v1257, %v1245
        %v1260 = vadd.f32 %v1232, %v1258
        %v1261 = vadd.f32 %v1233, %v1259
        %s1262 = sld [smem:[#allocation8 + $0x45]]
        %v1263 = vstv %s1262
        %v1264 = vmul.f32 %v1263, %v1243
        %v1265 = vmul.f32 %v1263, %v1245
        %v1266 = vadd.f32 %v1238, %v1264
        %v1267 = vadd.f32 %v1239, %v1265
        %s1268 = sld [smem:[#allocation8 + $0x10]]
        %v1269 = vstv %s1268
        %v1270 = vmul.f32 %v1269, %v1240
        %v1271 = vmul.f32 %v1269, %v1241
        %v1272 = vadd.f32 %v1254, %v1270
        %v1273 = vadd.f32 %v1255, %v1271
        %s1274 = sld [smem:[#allocation8 + $0x2b]]
        %v1275 = vstv %s1274
        %v1276 = vmul.f32 %v1275, %v1240
        %v1277 = vmul.f32 %v1275, %v1241
        %v1278 = vadd.f32 %v1260, %v1276
        %v1279 = vadd.f32 %v1261, %v1277
        %s1280 = sld [smem:[#allocation8 + $0x46]]
        %v1281 = vstv %s1280
        %v1282 = vmul.f32 %v1281, %v1240
        %v1283 = vmul.f32 %v1281, %v1241
        %v1284 = vadd.f32 %v1266, %v1282
        %v1285 = vadd.f32 %v1267, %v1283
        %s1286 = sld [smem:[#allocation8 + $0x11]]
        %v1287 = vstv %s1286
        %v1288 = vmul.f32 %v1287, %v1247
        %v1289 = vmul.f32 %v1287, %v1249
        %v1290 = vadd.f32 %v1272, %v1288
        %v1291 = vadd.f32 %v1273, %v1289
        %s1292 = sld [smem:[#allocation8 + $0x2c]]
        %v1293 = vstv %s1292
        %v1294 = vmul.f32 %v1293, %v1247
        %v1295 = vmul.f32 %v1293, %v1249
        %v1296 = vadd.f32 %v1278, %v1294
        %v1297 = vadd.f32 %v1279, %v1295
        %s1298 = sld [smem:[#allocation8 + $0x47]]
        %v1299 = vstv %s1298
        %v1300 = vmul.f32 %v1299, %v1247
        %v1301 = vmul.f32 %v1299, %v1249
        %v1302 = vadd.f32 %v1284, %v1300
        %v1303 = vadd.f32 %v1285, %v1301
        %v1304 = vld [vmem:[%s309] sm:$0xff]
        %v1305 = vld [vmem:[%s309 + $0x8] sm:$0xff]
        %1306 = vrot.lane.b32.xlu0 %v1304, 1
        %v1307 = vpop.permute.xlu0 %1306
        %1308 = vrot.lane.b32.xlu0 %v1305, 1
        %v1309 = vpop.permute.xlu0 %1308
        %1310 = vrot.lane.b32.xlu0 %v1304, 127
        %v1311 = vpop.permute.xlu0 %1310
        %1312 = vrot.lane.b32.xlu0 %v1305, 127
        %v1313 = vpop.permute.xlu0 %1312
        %s1314 = sld [smem:[#allocation8 + $0x12]]
        %v1315 = vstv %s1314
        %v1316 = vmul.f32 %v1315, %v1307
        %v1317 = vmul.f32 %v1315, %v1309
        %v1318 = vadd.f32 %v1290, %v1316
        %v1319 = vadd.f32 %v1291, %v1317
        %s1320 = sld [smem:[#allocation8 + $0x2d]]
        %v1321 = vstv %s1320
        %v1322 = vmul.f32 %v1321, %v1307
        %v1323 = vmul.f32 %v1321, %v1309
        %v1324 = vadd.f32 %v1296, %v1322
        %v1325 = vadd.f32 %v1297, %v1323
        %s1326 = sld [smem:[#allocation8 + $0x48]]
        %v1327 = vstv %s1326
        %v1328 = vmul.f32 %v1327, %v1307
        %v1329 = vmul.f32 %v1327, %v1309
        %v1330 = vadd.f32 %v1302, %v1328
        %v1331 = vadd.f32 %v1303, %v1329
        %s1332 = sld [smem:[#allocation8 + $0x13]]
        %v1333 = vstv %s1332
        %v1334 = vmul.f32 %v1333, %v1304
        %v1335 = vmul.f32 %v1333, %v1305
        %v1336 = vadd.f32 %v1318, %v1334
        %v1337 = vadd.f32 %v1319, %v1335
        %s1338 = sld [smem:[#allocation8 + $0x2e]]
        %v1339 = vstv %s1338
        %v1340 = vmul.f32 %v1339, %v1304
        %v1341 = vmul.f32 %v1339, %v1305
        %v1342 = vadd.f32 %v1324, %v1340
        %v1343 = vadd.f32 %v1325, %v1341
        %s1344 = sld [smem:[#allocation8 + $0x49]]
        %v1345 = vstv %s1344
        %v1346 = vmul.f32 %v1345, %v1304
        %v1347 = vmul.f32 %v1345, %v1305
        %v1348 = vadd.f32 %v1330, %v1346
        %v1349 = vadd.f32 %v1331, %v1347
        %s1350 = sld [smem:[#allocation8 + $0x14]]
        %v1351 = vstv %s1350
        %v1352 = vmul.f32 %v1351, %v1311
        %v1353 = vmul.f32 %v1351, %v1313
        %v1354 = vadd.f32 %v1336, %v1352
        %v1355 = vadd.f32 %v1337, %v1353
        %s1356 = sld [smem:[#allocation8 + $0x2f]]
        %v1357 = vstv %s1356
        %v1358 = vmul.f32 %v1357, %v1311
        %v1359 = vmul.f32 %v1357, %v1313
        %v1360 = vadd.f32 %v1342, %v1358
        %v1361 = vadd.f32 %v1343, %v1359
        %s1362 = sld [smem:[#allocation8 + $0x4a]]
        %v1363 = vstv %s1362
        %v1364 = vmul.f32 %v1363, %v1311
        %v1365 = vmul.f32 %v1363, %v1313
        %v1366 = vadd.f32 %v1348, %v1364
        %v1367 = vadd.f32 %v1349, %v1365
        %v1368 = vld [vmem:[%s309 + $0x1] sm:$0xff]
        %v1369 = vld [vmem:[%s309 + $0x9] sm:$0xff]
        %1370 = vrot.lane.b32.xlu0 %v1368, 1
        %v1371 = vpop.permute.xlu0 %1370
        %1372 = vrot.lane.b32.xlu0 %v1369, 1
        %v1373 = vpop.permute.xlu0 %1372
        %1374 = vrot.lane.b32.xlu0 %v1368, 127
        %v1375 = vpop.permute.xlu0 %1374
        %1376 = vrot.lane.b32.xlu0 %v1369, 127
        %v1377 = vpop.permute.xlu0 %1376
        %s1378 = sld [smem:[#allocation8 + $0x15]]
        %v1379 = vstv %s1378
        %v1380 = vmul.f32 %v1379, %v1371
        %v1381 = vmul.f32 %v1379, %v1373
        %v1382 = vadd.f32 %v1354, %v1380
        %v1383 = vadd.f32 %v1355, %v1381
        %s1384 = sld [smem:[#allocation8 + $0x30]]
        %v1385 = vstv %s1384
        %v1386 = vmul.f32 %v1385, %v1371
        %v1387 = vmul.f32 %v1385, %v1373
        %v1388 = vadd.f32 %v1360, %v1386
        %v1389 = vadd.f32 %v1361, %v1387
        %s1390 = sld [smem:[#allocation8 + $0x4b]]
        %v1391 = vstv %s1390
        %v1392 = vmul.f32 %v1391, %v1371
        %v1393 = vmul.f32 %v1391, %v1373
        %v1394 = vadd.f32 %v1366, %v1392
        %v1395 = vadd.f32 %v1367, %v1393
        %s1396 = sld [smem:[#allocation8 + $0x16]]
        %v1397 = vstv %s1396
        %v1398 = vmul.f32 %v1397, %v1368
        %v1399 = vmul.f32 %v1397, %v1369
        %v1400 = vadd.f32 %v1382, %v1398
        %v1401 = vadd.f32 %v1383, %v1399
        %s1402 = sld [smem:[#allocation8 + $0x31]]
        %v1403 = vstv %s1402
        %v1404 = vmul.f32 %v1403, %v1368
        %v1405 = vmul.f32 %v1403, %v1369
        %v1406 = vadd.f32 %v1388, %v1404
        %v1407 = vadd.f32 %v1389, %v1405
        %s1408 = sld [smem:[#allocation8 + $0x4c]]
        %v1409 = vstv %s1408
        %v1410 = vmul.f32 %v1409, %v1368
        %v1411 = vmul.f32 %v1409, %v1369
        %v1412 = vadd.f32 %v1394, %v1410
        %v1413 = vadd.f32 %v1395, %v1411
        %s1414 = sld [smem:[#allocation8 + $0x17]]
        %v1415 = vstv %s1414
        %v1416 = vmul.f32 %v1415, %v1375
        %v1417 = vmul.f32 %v1415, %v1377
        %v1418 = vadd.f32 %v1400, %v1416
        %v1419 = vadd.f32 %v1401, %v1417
        %s1420 = sld [smem:[#allocation8 + $0x32]]
        %v1421 = vstv %s1420
        %v1422 = vmul.f32 %v1421, %v1375
        %v1423 = vmul.f32 %v1421, %v1377
        %v1424 = vadd.f32 %v1406, %v1422
        %v1425 = vadd.f32 %v1407, %v1423
        %s1426 = sld [smem:[#allocation8 + $0x4d]]
        %v1427 = vstv %s1426
        %v1428 = vmul.f32 %v1427, %v1375
        %v1429 = vmul.f32 %v1427, %v1377
        %v1430 = vadd.f32 %v1412, %v1428
        %v1431 = vadd.f32 %v1413, %v1429
        %v1432 = vld [vmem:[%s309 + $0x2] sm:$0xff]
        %v1433 = vld [vmem:[%s309 + $0xa] sm:$0xff]
        %1434 = vrot.lane.b32.xlu0 %v1432, 1
        %v1435 = vpop.permute.xlu0 %1434
        %1436 = vrot.lane.b32.xlu0 %v1433, 1
        %v1437 = vpop.permute.xlu0 %1436
        %1438 = vrot.lane.b32.xlu0 %v1432, 127
        %v1439 = vpop.permute.xlu0 %1438
        %1440 = vrot.lane.b32.xlu0 %v1433, 127
        %v1441 = vpop.permute.xlu0 %1440
        %s1442 = sld [smem:[#allocation8 + $0x18]]
        %v1443 = vstv %s1442
        %v1444 = vmul.f32 %v1443, %v1435
        %v1445 = vmul.f32 %v1443, %v1437
        %v1446 = vadd.f32 %v1418, %v1444
        %v1447 = vadd.f32 %v1419, %v1445
        %s1448 = sld [smem:[#allocation8 + $0x33]]
        %v1449 = vstv %s1448
        %v1450 = vmul.f32 %v1449, %v1435
        %v1451 = vmul.f32 %v1449, %v1437
        %v1452 = vadd.f32 %v1424, %v1450
        %v1453 = vadd.f32 %v1425, %v1451
        %s1454 = sld [smem:[#allocation8 + $0x4e]]
        %v1455 = vstv %s1454
        %v1456 = vmul.f32 %v1455, %v1435
        %v1457 = vmul.f32 %v1455, %v1437
        %v1458 = vadd.f32 %v1430, %v1456
        %v1459 = vadd.f32 %v1431, %v1457
        %s1460 = sld [smem:[#allocation8 + $0x19]]
        %v1461 = vstv %s1460
        %v1462 = vmul.f32 %v1461, %v1432
        %v1463 = vmul.f32 %v1461, %v1433
        %v1464 = vadd.f32 %v1446, %v1462
        %v1465 = vadd.f32 %v1447, %v1463
        %s1466 = sld [smem:[#allocation8 + $0x34]]
        %v1467 = vstv %s1466
        %v1468 = vmul.f32 %v1467, %v1432
        %v1469 = vmul.f32 %v1467, %v1433
        %v1470 = vadd.f32 %v1452, %v1468
        %v1471 = vadd.f32 %v1453, %v1469
        %s1472 = sld [smem:[#allocation8 + $0x4f]]
        %v1473 = vstv %s1472
        %v1474 = vmul.f32 %v1473, %v1432
        %v1475 = vmul.f32 %v1473, %v1433
        %v1476 = vadd.f32 %v1458, %v1474
        %v1477 = vadd.f32 %v1459, %v1475
        %s1478 = sld [smem:[#allocation8 + $0x1a]]
        %v1479 = vstv %s1478
        %v1480 = vmul.f32 %v1479, %v1439
        %v1481 = vmul.f32 %v1479, %v1441
        %v1482 = vadd.f32 %v1464, %v1480
        %v1483 = vadd.f32 %v1465, %v1481
        %s1484 = sld [smem:[#allocation8 + $0x35]]
        %v1485 = vstv %s1484
        %v1486 = vmul.f32 %v1485, %v1439
        %v1487 = vmul.f32 %v1485, %v1441
        %v1488 = vadd.f32 %v1470, %v1486
        %v1489 = vadd.f32 %v1471, %v1487
        %s1490 = sld [smem:[#allocation8 + $0x50]]
        %v1491 = vstv %s1490
        %v1492 = vmul.f32 %v1491, %v1439
        %v1493 = vmul.f32 %v1491, %v1441
        %v1494 = vadd.f32 %v1476, %v1492
        %v1495 = vadd.f32 %v1477, %v1493
        %v1496 = vld [vmem:[%s301 + $0x1] sm:$0xff]
        %v1497 = vld [vmem:[%s301 + $0x9] sm:$0xff]
        %v1498 = vmax.f32 %v1482, 0.0
        %v1499 = vmax.f32 %v1483, 0.0
        %v1500 = vadd.f32 %v1498, %v1496
        %v1501 = vadd.f32 %v1499, %v1497
        %1502 = vst [vmem:[%s296] sm:$0xff] %v1500
        %1503 = vst [vmem:[%s296 + $0x8] sm:$0xff] %v1501
        %v1504 = vld [vmem:[%s510 + $0x1] sm:$0xff]
        %v1505 = vld [vmem:[%s510 + $0x9] sm:$0xff]
        %v1506 = vmax.f32 %v1488, 0.0
        %v1507 = vmax.f32 %v1489, 0.0
        %v1508 = vadd.f32 %v1506, %v1504
        %v1509 = vadd.f32 %v1507, %v1505
        %s1510 = scalar_lea.vmem %s296, 16 [#allocation11]
        %1511 = vst [vmem:[%s1510] sm:$0xff] %v1508
        %1512 = vst [vmem:[%s1510 + $0x8] sm:$0xff] %v1509
        %v1513 = vld [vmem:[%s703 + $0x1] sm:$0xff]
        %v1514 = vld [vmem:[%s703 + $0x9] sm:$0xff]
        %v1515 = vmax.f32 %v1494, 0.0
        %v1516 = vmax.f32 %v1495, 0.0
        %v1517 = vadd.f32 %v1515, %v1513
        %v1518 = vadd.f32 %v1516, %v1514
        %s1519 = scalar_lea.vmem %s296, 32 [#allocation11]
        %1520 = vst [vmem:[%s1519] sm:$0xff] %v1517
        %1521 = vst [vmem:[%s1519 + $0x8] sm:$0xff] %v1518
        %s1522 = sand.u32 %s162, 1
        %s1523 = scalar_lea.sflag [#allocation4], %s1522
        %s1524 = sand.u32 %s162, 1
        %s1525 = smul.addr %s1524, 48
        %s1526 = scalar_lea.vmem [#allocation11], %s1525
        // Predicated region
        $region61: #{tpu_custom_call.1} parent=43 // pred_check
          %p1527 = pneg %p172
        $region62: #{tpu_custom_call.1} parent=43 // pred_check_branch
          %1529 = sbr.rel (%p1527) target = $region64
        $region63: #{tpu_custom_call.1} parent=43 // pred_region
          %1531 = vsyncadd %s1523, 0
          %s1532 = smul.addr %s23, 6
          %s1533 = smul.addr %s1532, 8
          %s1534 = scalar_lea.hbm %s6, %s1533
          %s1535 = sshll.u32 %s1526, 4
          %s1536 = int_to_ptr.vmem [resolvable:$true] %s1535
          %s1537 = sshll.u32 %s1534, 4
          %s1538 = int_to_ptr.hbm [resolvable:$true] %s1537
          %1543 = dma.vmem_to_hbm [thread:$0]  %s1536, 768, %s1538, %s1523, 128, 128, 8
        $region64: #{tpu_custom_call.1} parent=43 // pred_fallthru
          _
      $region44: #{tpu_custom_call.1} parent=5 // pred_fallthru
        _
      %p1544 = scmp.le.s32.totalorder 2, %s18
      // Predicated region
      $region65: #{tpu_custom_call.1} parent=5 // pred_check
        %p1545 = pneg %p1544
      $region66: #{tpu_custom_call.1} parent=5 // pred_check_branch
        %1547 = sbr.rel (%p1545) target = $region68
      $region67: #{tpu_custom_call.1} parent=5 // pred_region
        %s1548 = ssub.s32 %s18, 2
        // Predicated region
        $region69: #{tpu_custom_call.1} parent=67 // pred_check
          %p1549 = pneg %p178
        $region70: #{tpu_custom_call.1} parent=67 // pred_check_branch
          %1551 = sbr.rel (%p1549) target = $region72
        $region71: #{tpu_custom_call.1} parent=67 // pred_region
          %s1552 = sand.u32 %s163, 1
          %s1553 = scalar_lea.sflag [#allocation4], %s1552
          %s1554 = sand.u32 %s163, 1
          %s1555 = smul.addr %s1554, 48
          %s1556 = scalar_lea.vmem [#allocation11], %s1555
          %1558 = dma.done %s1553, 768
        $region72: #{tpu_custom_call.1} parent=67 // pred_fallthru
          _
      $region68: #{tpu_custom_call.1} parent=5 // pred_fallthru
        _
    $region6: #{tpu_custom_call.1} parent=1 // loop_footer
      %s22 = sadd.s32 1, %s18
    $region7: #{tpu_custom_call.1} parent=1 // loop_footer_branch
      %17 = sbr.rel target = $region3
    $region8: #{tpu_custom_call.1} parent=1 // loop_exit
      _
    %1559 = vsyncpa [#allocation4], 1
    %s1560 = scalar_lea.sflag [#allocation4], 1
    %1561 = vsyncpa %s1560, 1
    %1562 = vsyncpa [#allocation5], 1
    %s1563 = scalar_lea.sflag [#allocation5], 1
    %1564 = vsyncpa %s1563, 1
    %1565 = vsyncpa [#allocation7], 1
    %1566 = vsyncpa [#allocation10], 1

</llo_original>
